<compile_context>
chip_gen: v6e
topology: v6e:2x2x1
jax: 0.10.0
libtpu: 0.0.40
codegen_flags: <defaults>
</compile_context>

<pallas_src>
import functools
import math

import jax
import jax.numpy as jnp
from jax.experimental import pallas as pl
from jax.experimental.pallas import tpu as pltpu


def _full_vmem():
    return pl.BlockSpec(memory_space=pltpu.MemorySpace.VMEM)


def _batch_tile(B, max_tile=256):
    """Batch tile: a 16-aligned divisor of B giving >= 2 grid tiles (megacore
    on v7x, bf16 sublane packing), else the whole batch."""
    if B >= 32:
        cap = min(max_tile, B // 2)
        start = cap - (cap % 16)
        for tb in range(start, 15, -16):
            if B % tb == 0:
                return tb
    return B


def _vmem_limit_bytes(T, TB, E):
    """Generation-aware VMEM request derived from the actual tile footprint."""
    scratch = T * TB * (5 * E) * 2                        # bf16 xproj + lstm-out scratch
    blocks = 2 * (T * TB * E * 2                          # double-buffered history block
                  + 2 * TB * E * 4                        # user / item embedding blocks
                  + T * TB * 4 + TB * 4)                  # outputs
    attn_tmp = 2 * T * TB * 256 * 4                       # s2 / z f32 temporaries
    est = scratch + blocks + attn_tmp + (4 << 20)         # + weights / compiler headroom
    limit = int(est * 1.5)
    try:                                                  # cap at ~3/4 physical VMEM
        cap = int(pltpu.get_tpu_info().vmem_capacity_bytes) * 3 // 4
    except Exception:
        cap = 48 << 20                                    # safe on v7x's 64 MiB
    return max(32 << 20, min(limit, cap))


# ---------------------------------------------------------------------------
# Fused kernel: LSTM over history -> attention pooling -> shared MLP tower
#               -> merge(+ReLU) -> final projection.
# ---------------------------------------------------------------------------
def make_fused_kernel(n_hidden):
    def kernel(*refs):
        (xh_ref, xu_ref, xi_ref,
         wih_ref, whh_ref, lstm_b_ref,
         ws2w_ref, ws2b_ref, ws1w_ref,
         m0wa_ref, m0wb_ref, m0b_ref) = refs[:12]
        hidden = refs[12:12 + 2 * n_hidden]
        (mwr_ref, mwx_ref, mb_ref, fw_ref, fb_ref,
         x_ref, wt_ref, xproj_sc, out_sc) = refs[12 + 2 * n_hidden:]

        T, TB, E = xh_ref.shape
        f32 = jnp.float32
        bf16 = jnp.bfloat16

        # --- Hoisted input projection: one large-M bf16 matmul off the serial path.
        xh_flat = xh_ref[...].reshape(T * TB, E)                       # bf16
        xproj = jnp.dot(xh_flat, wih_ref[...],
                        preferred_element_type=f32) + lstm_b_ref[...]  # (T*TB, 4E) f32
        xproj_sc[...] = xproj.astype(bf16)

        # --- Serial LSTM recurrence: one fused (TB,E)x(E,4E) matmul per step and a
        #     single full-width sigmoid (g-gate columns pre-scaled by 2 at init,
        #     so tanh(g) = 2*sigmoid(2g) - 1 and tanh(c) = 2*sigmoid(2c) - 1).
        def lstm_step(start, hs, cs):
            gates = (xproj_sc[pl.ds(start, TB), :].astype(f32)
                     + jnp.dot(hs.astype(bf16), whh_ref[...],
                               preferred_element_type=f32))            # (TB, 4E) f32
            act = jax.nn.sigmoid(gates)                                # full 128-lane EUP pass
            i_g = act[:, 0:E]                                          # PyTorch order i,f,g,o
            f_g = act[:, E:2 * E]
            g_t = 2.0 * act[:, 2 * E:3 * E] - 1.0                      # tanh(g)
            o_g = act[:, 3 * E:4 * E]
            cs = f_g * cs + i_g * g_t
            hs = o_g * (2.0 * jax.nn.sigmoid(2.0 * cs) - 1.0)          # o * tanh(c)
            out_sc[pl.ds(start, TB), :] = hs.astype(bf16)
            return hs, cs

        hs = jnp.zeros((TB, E), f32)
        cs = jnp.zeros((TB, E), f32)
        if T <= 16:
            for t in range(T):
                hs, cs = lstm_step(t * TB, hs, cs)
        else:
            # TODO(synk): tune a small unroll factor here once T gets large.
            def body(t, carry):
                start = pl.multiple_of(t * TB, TB)
                return lstm_step(start, *carry)
            hs, cs = jax.lax.fori_loop(0, T, body, (hs, cs))

        # --- Attention logits: one batched matmul + one lane reduce (no per-t scatter).
        # TODO(synk): for very large T, compute this stage in T-chunks so the
        # (T*TB, 256) s2/z temporaries never materialize at full size.
        s2 = jnp.tanh(jnp.dot(out_sc[...], ws2w_ref[...],
                              preferred_element_type=f32) + ws2b_ref[...])   # (T*TB, 256)
        z = s2 * ws1w_ref[...]                                               # (T*TB, 256)
        logits = jnp.sum(z.reshape(T, TB, 256), axis=-1, keepdims=True)      # (T, TB, 1)
        # (W_s1 bias omitted: a constant shift before softmax is a no-op.)

        # --- Softmax over time + weighted sum of LSTM outputs (single reduce).
        m = jnp.max(logits, axis=0, keepdims=True)
        e = jnp.exp(logits - m)
        w3 = e / jnp.sum(e, axis=0, keepdims=True)                           # (T, TB, 1)
        wt_ref[...] = w3
        out3 = out_sc[...].astype(f32).reshape(T, TB, E)
        atnn = jnp.sum(out3 * w3, axis=0)                                    # (TB, E)

        # --- Shared MLP tower (mlp0 without ReLU, hidden layers with ReLU),
        #     concats expressed as split matmuls; the item-embed half is shared.
        xu = xu_ref[...]
        xi = xi_ref[...]
        common = jnp.dot(xi, m0wb_ref[...], preferred_element_type=f32) + m0b_ref[...]
        h_long = jnp.dot(xu, m0wa_ref[...], preferred_element_type=f32) + common
        h_short = jnp.dot(atnn, m0wa_ref[...], preferred_element_type=f32) + common
        for li in range(n_hidden):
            w = hidden[2 * li][...]
            b = hidden[2 * li + 1][...]
            h_long = jnp.maximum(jnp.dot(h_long, w, preferred_element_type=f32) + b, 0.0)
            h_short = jnp.maximum(jnp.dot(h_short, w, preferred_element_type=f32) + b, 0.0)

        # merge(cat([rnn_out, xmlp], dim=1)) as split matmuls, then ReLU + final.
        merged = (jnp.dot(h_short, mwr_ref[...], preferred_element_type=f32)
                  + jnp.dot(h_long, mwx_ref[...], preferred_element_type=f32)
                  + mb_ref[...])
        merged = jnp.maximum(merged, 0.0)
        x_ref[...] = (jnp.sum(merged * fw_ref[...], axis=-1, keepdims=True)
                      + fb_ref[...])                                         # (TB, 1)

    return kernel


# ---------------------------------------------------------------------------
# Parameter init (mirrors the shapes / distributions of the PyTorch __init__).
# ---------------------------------------------------------------------------
def init_params(key, nb_users, nb_items, embed_dim, mlp_layer_sizes):
    E = embed_dim
    f32 = jnp.float32
    keys = iter(jax.random.split(key, 64))

    def nk():
        return next(keys)

    p = {}
    p['user_embed'] = 0.01 * jax.random.normal(nk(), (nb_users, E), f32)
    p['item_embed'] = 0.01 * jax.random.normal(nk(), (nb_items, E), f32)

    # LSTM (single layer, hidden == E).  PyTorch packs gates (i,f,g,o) along
    # dim 0 of (4E, E); we store the transpose (E, 4E) for one fused matmul per
    # step, fold b_ih + b_hh, pre-scale the g-gate block by 2 (full-width
    # sigmoid trick) and keep the weights in bf16 for the MXU.
    k = 1.0 / math.sqrt(E)
    w_ih = jax.random.uniform(nk(), (4 * E, E), f32, -k, k)
    w_hh = jax.random.uniform(nk(), (4 * E, E), f32, -k, k)
    b_ih = jax.random.uniform(nk(), (4 * E,), f32, -k, k)
    b_hh = jax.random.uniform(nk(), (4 * E,), f32, -k, k)
    gate_scale = jnp.concatenate([jnp.ones((2 * E,), f32),
                                  2.0 * jnp.ones((E,), f32),
                                  jnp.ones((E,), f32)])
    p['lstm_wih'] = (w_ih.T * gate_scale[None, :]).astype(jnp.bfloat16)   # (E, 4E)
    p['lstm_whh'] = (w_hh.T * gate_scale[None, :]).astype(jnp.bfloat16)   # (E, 4E)
    p['lstm_b'] = ((b_ih + b_hh) * gate_scale).reshape(1, 4 * E)          # (1, 4E) f32

    def linear(fan_in, fan_out, w_limit=None):
        wl = (1.0 / math.sqrt(fan_in)) if w_limit is None else w_limit
        bl = 1.0 / math.sqrt(fan_in)          # PyTorch nn.Linear default bias init
        w = jax.random.uniform(nk(), (fan_in, fan_out), f32, -wl, wl)
        b = jax.random.uniform(nk(), (1, fan_out), f32, -bl, bl)
        return w, b

    # W_s2: E -> 256 ; W_s1: 256 -> 1 (weight kept as a (1, 256) row).
    ws2_w, p['ws2_b'] = linear(E, 256)
    p['ws2_w'] = ws2_w.astype(jnp.bfloat16)
    ws1_w, ws1_b = linear(256, 1)
    p['ws1_w'] = ws1_w.T                       # (1, 256)
    p['ws1_b'] = ws1_b                         # unused in-kernel (pre-softmax shift)

    # mlp0: 2E -> sizes[0], split into the two concat halves.
    h0 = mlp_layer_sizes[0]
    mlp0_w, p['mlp0_b'] = linear(2 * E, h0)
    p['mlp0_w_a'] = mlp0_w[:E, :]              # multiplies first half of the concat
    p['mlp0_w_b'] = mlp0_w[E:, :]              # multiplies the item-embed half

    # hidden mlp layers: glorot-uniform weights.
    p['mlp_ws'], p['mlp_bs'] = [], []
    for i in range(1, len(mlp_layer_sizes)):
        fi, fo = mlp_layer_sizes[i - 1], mlp_layer_sizes[i]
        w, b = linear(fi, fo, w_limit=math.sqrt(6.0 / (fi + fo)))
        p['mlp_ws'].append(w)
        p['mlp_bs'].append(b)

    # merge: 2H -> H (lecun uniform), split into the two concat halves.
    H = mlp_layer_sizes[-1]
    merge_w, p['merge_b'] = linear(2 * H, H, w_limit=math.sqrt(3.0 / (2 * H)))
    p['merge_w_r'] = merge_w[:H, :]            # multiplies the rnn (attention) path
    p['merge_w_x'] = merge_w[H:, :]            # multiplies the xmlp (user/item) path

    # final: H -> 1 (lecun uniform), kept as a (1, H) row.
    final_w, p['final_b'] = linear(H, 1, w_limit=math.sqrt(3.0 / H))
    p['final_w'] = final_w.T                   # (1, H)
    return p


# ---------------------------------------------------------------------------
# Forward wrapper: embedding gathers + ONE fused pallas_call.
# ---------------------------------------------------------------------------
def lspm_forward(params, user, item, history, sigmoid=False):
    user_emb = params['user_embed']
    item_emb = params['item_embed']

    xmlpu = jnp.take(user_emb, user, axis=0)                      # (B, E) f32
    xmlpi = jnp.take(item_emb, item, axis=0)                      # (B, E) f32
    xhistory = jnp.take(item_emb, history, axis=0)                # (B, T, E)
    xhistory = jnp.transpose(xhistory, (1, 0, 2)).astype(jnp.bfloat16)   # (T, B, E)

    B = user.shape[0]
    T = history.shape[1]
    E = user_emb.shape[1]
    TB = _batch_tile(B)
    n_hidden = len(params['mlp_ws'])

    inputs = [xhistory, xmlpu, xmlpi,
              params['lstm_wih'], params['lstm_whh'], params['lstm_b'],
              params['ws2_w'], params['ws2_b'], params['ws1_w'],
              params['mlp0_w_a'], params['mlp0_w_b'], params['mlp0_b']]
    for w, b in zip(params['mlp_ws'], params['mlp_bs']):
        inputs += [w, b]
    inputs += [params['merge_w_r'], params['merge_w_x'], params['merge_b'],
               params['final_w'], params['final_b']]

    in_specs = ([pl.BlockSpec((T, TB, E), lambda i: (0, i, 0)),
                 pl.BlockSpec((TB, E), lambda i: (i, 0)),
                 pl.BlockSpec((TB, E), lambda i: (i, 0))]
                + [_full_vmem()] * (len(inputs) - 3))

    x, w_soft = pl.pallas_call(
        make_fused_kernel(n_hidden),
        grid=(B // TB,),
        out_shape=(jax.ShapeDtypeStruct((B, 1), jnp.float32),
                   jax.ShapeDtypeStruct((T, B, 1), jnp.float32)),
        in_specs=in_specs,
        out_specs=(pl.BlockSpec((TB, 1), lambda i: (i, 0)),
                   pl.BlockSpec((T, TB, 1), lambda i: (0, i, 0))),
        scratch_shapes=[
            pltpu.VMEM((T * TB, 4 * E), jnp.bfloat16),   # hoisted input projections
            pltpu.VMEM((T * TB, E), jnp.bfloat16),       # LSTM outputs
        ],
        compiler_params=pltpu.CompilerParams(
            dimension_semantics=("parallel",),
            vmem_limit_bytes=_vmem_limit_bytes(T, TB, E)),
    )(*inputs)

    if sigmoid:
        x = jax.nn.sigmoid(x)

    weights = jnp.transpose(w_soft, (1, 2, 0))   # (B, 1, T), matches torch
    return x, weights


if __name__ == "__main__":
    nb_users, nb_items = 10, 20
    embed_dim = 32
    mlp_layer_sizes = [64, 32]
    mlp_layer_regs = [0.0, 0.0]   # unused at inference; kept for parity with the spec
    B, T = 2, 8

    key = jax.random.PRNGKey(0)
    pkey, ukey, ikey, hkey = jax.random.split(key, 4)
    params = init_params(pkey, nb_users, nb_items, embed_dim, mlp_layer_sizes)

    user = jax.random.randint(ukey, (B,), 0, nb_users)
    item = jax.random.randint(ikey, (B,), 0, nb_items)
    history = jax.random.randint(hkey, (B, T), 0, nb_items)

    fwd = jax.jit(functools.partial(lspm_forward, sigmoid=False))
    x, weights = fwd(params, user, item, history)
    jax.block_until_ready((x, weights))

    assert x.shape == (B, 1)
    assert weights.shape == (B, 1, T)
    print("KERNEL_OK")
</pallas_src>

<mosaic_0001>
module attributes {stable_mosaic.version = 11 : i64} {
  func.func @kernel(%arg0: i32, %arg1: memref<8x2x32xbf16, #tpu.memory_space<vmem>>, %arg2: memref<2x32xf32, #tpu.memory_space<vmem>>, %arg3: memref<2x32xf32, #tpu.memory_space<vmem>>, %arg4: memref<32x128xbf16, #tpu.memory_space<vmem>>, %arg5: memref<32x128xbf16, #tpu.memory_space<vmem>>, %arg6: memref<1x128xf32, #tpu.memory_space<vmem>>, %arg7: memref<32x256xbf16, #tpu.memory_space<vmem>>, %arg8: memref<1x256xf32, #tpu.memory_space<vmem>>, %arg9: memref<1x256xf32, #tpu.memory_space<vmem>>, %arg10: memref<32x64xf32, #tpu.memory_space<vmem>>, %arg11: memref<32x64xf32, #tpu.memory_space<vmem>>, %arg12: memref<1x64xf32, #tpu.memory_space<vmem>>, %arg13: memref<64x32xf32, #tpu.memory_space<vmem>>, %arg14: memref<1x32xf32, #tpu.memory_space<vmem>>, %arg15: memref<32x32xf32, #tpu.memory_space<vmem>>, %arg16: memref<32x32xf32, #tpu.memory_space<vmem>>, %arg17: memref<1x32xf32, #tpu.memory_space<vmem>>, %arg18: memref<1x32xf32, #tpu.memory_space<vmem>>, %arg19: memref<1x1xf32, #tpu.memory_space<vmem>>, %arg20: memref<2x1xf32, #tpu.memory_space<vmem>>, %arg21: memref<8x2x1xf32, #tpu.memory_space<vmem>>, %arg22: memref<16x128xbf16, #tpu.memory_space<vmem>>, %arg23: memref<16x32xbf16, #tpu.memory_space<vmem>>) attributes {dimension_semantics = [#tpu.dimension_semantics<parallel>], iteration_bounds = array<i64: 1>, scalar_prefetch = 0 : i64, scratch_operands = 2 : i64, tpu.core_type = #tpu.core_type<tc>, window_params = [{transform_indices = @transform_0, window_bounds = array<i64: 8, 2, 32>}, {transform_indices = @transform_1, window_bounds = array<i64: 2, 32>}, {transform_indices = @transform_2, window_bounds = array<i64: 2, 32>}, {pipeline_mode = #tpu.pipeline_mode<synchronous>, transform_indices = @transform_3, window_bounds = array<i64: 32, 128>}, {pipeline_mode = #tpu.pipeline_mode<synchronous>, transform_indices = @transform_4, window_bounds = array<i64: 32, 128>}, {pipeline_mode = #tpu.pipeline_mode<synchronous>, transform_indices = @transform_5, window_bounds = array<i64: 1, 128>}, {pipeline_mode = #tpu.pipeline_mode<synchronous>, transform_indices = @transform_6, window_bounds = array<i64: 32, 256>}, {pipeline_mode = #tpu.pipeline_mode<synchronous>, transform_indices = @transform_7, window_bounds = array<i64: 1, 256>}, {pipeline_mode = #tpu.pipeline_mode<synchronous>, transform_indices = @transform_8, window_bounds = array<i64: 1, 256>}, {pipeline_mode = #tpu.pipeline_mode<synchronous>, transform_indices = @transform_9, window_bounds = array<i64: 32, 64>}, {pipeline_mode = #tpu.pipeline_mode<synchronous>, transform_indices = @transform_10, window_bounds = array<i64: 32, 64>}, {pipeline_mode = #tpu.pipeline_mode<synchronous>, transform_indices = @transform_11, window_bounds = array<i64: 1, 64>}, {pipeline_mode = #tpu.pipeline_mode<synchronous>, transform_indices = @transform_12, window_bounds = array<i64: 64, 32>}, {pipeline_mode = #tpu.pipeline_mode<synchronous>, transform_indices = @transform_13, window_bounds = array<i64: 1, 32>}, {pipeline_mode = #tpu.pipeline_mode<synchronous>, transform_indices = @transform_14, window_bounds = array<i64: 32, 32>}, {pipeline_mode = #tpu.pipeline_mode<synchronous>, transform_indices = @transform_15, window_bounds = array<i64: 32, 32>}, {pipeline_mode = #tpu.pipeline_mode<synchronous>, transform_indices = @transform_16, window_bounds = array<i64: 1, 32>}, {pipeline_mode = #tpu.pipeline_mode<synchronous>, transform_indices = @transform_17, window_bounds = array<i64: 1, 32>}, {pipeline_mode = #tpu.pipeline_mode<synchronous>, transform_indices = @transform_18, window_bounds = array<i64: 1, 1>}, {transform_indices = @transform_19, window_bounds = array<i64: 2, 1>}, {transform_indices = @transform_20, window_bounds = array<i64: 8, 2, 1>}]} {
    %c0 = arith.constant 0 : index
    %c0_0 = arith.constant 0 : index
    %c0_1 = arith.constant 0 : index
    %0 = vector.load %arg1[%c0, %c0_0, %c0_1] : memref<8x2x32xbf16, #tpu.memory_space<vmem>>, vector<8x2x32xbf16>
    %1 = vector.shape_cast %0 : vector<8x2x32xbf16> to vector<16x32xbf16>
    %c0_2 = arith.constant 0 : index
    %c0_3 = arith.constant 0 : index
    %2 = vector.load %arg4[%c0_2, %c0_3] : memref<32x128xbf16, #tpu.memory_space<vmem>>, vector<32x128xbf16>
    %cst = arith.constant dense<0.000000e+00> : vector<16x128xf32>
    %3 = tpu.matmul %1, %2, %cst {dimension_numbers = #tpu.dot_dimension_numbers<[1], [0], [0], [1], [0, 0, 1, 1], [], []>} : vector<16x32xbf16>, vector<32x128xbf16>, vector<16x128xf32> -> vector<16x128xf32>
    %c0_4 = arith.constant 0 : index
    %c0_5 = arith.constant 0 : index
    %4 = vector.load %arg6[%c0_4, %c0_5] : memref<1x128xf32, #tpu.memory_space<vmem>>, vector<1x128xf32>
    %5 = vector.broadcast %4 : vector<1x128xf32> to vector<16x128xf32>
    %6 = arith.addf %3, %5 : vector<16x128xf32>
    %7 = arith.truncf %6 : vector<16x128xf32> to vector<16x128xbf16>
    %c0_6 = arith.constant 0 : index
    %c0_7 = arith.constant 0 : index
    %8 = vector.load %arg22[%c0_6, %c0_7] : memref<16x128xbf16, #tpu.memory_space<vmem>>, vector<16x128xbf16>
    tpu.vector_store %arg22[%c0_6, %c0_7], %7 {strides = array<i32>} : memref<16x128xbf16, #tpu.memory_space<vmem>>, vector<16x128xbf16>,
    %cst_8 = arith.constant 0.000000e+00 : f32
    %9 = vector.broadcast %cst_8 : f32 to vector<2x32xf32>
    %cst_9 = arith.constant 0.000000e+00 : f32
    %10 = vector.broadcast %cst_9 : f32 to vector<2x32xf32>
    %c0_10 = arith.constant 0 : index
    %c0_11 = arith.constant 0 : index
    %11 = vector.load %arg22[%c0_10, %c0_11] : memref<16x128xbf16, #tpu.memory_space<vmem>>, vector<2x128xbf16>
    %12 = arith.extf %11 : vector<2x128xbf16> to vector<2x128xf32>
    %13 = arith.truncf %9 : vector<2x32xf32> to vector<2x32xbf16>
    %c0_12 = arith.constant 0 : index
    %c0_13 = arith.constant 0 : index
    %14 = vector.load %arg5[%c0_12, %c0_13] : memref<32x128xbf16, #tpu.memory_space<vmem>>, vector<32x128xbf16>
    %cst_14 = arith.constant dense<0.000000e+00> : vector<2x128xf32>
    %15 = tpu.matmul %13, %14, %cst_14 {dimension_numbers = #tpu.dot_dimension_numbers<[1], [0], [0], [1], [0, 0, 1, 1], [], []>} : vector<2x32xbf16>, vector<32x128xbf16>, vector<2x128xf32> -> vector<2x128xf32>
    %16 = arith.addf %12, %15 : vector<2x128xf32>
    %17 = arith.negf %16 : vector<2x128xf32>
    %18 = math.exp %17 : vector<2x128xf32>
    %cst_15 = arith.constant 1.000000e+00 : f32
    %19 = vector.broadcast %cst_15 : f32 to vector<2x128xf32>
    %20 = arith.addf %19, %18 : vector<2x128xf32>
    %21 = arith.divf %19, %20 : vector<2x128xf32>
    %22 = vector.extract_strided_slice %21 {offsets = [0, 0], sizes = [2, 32], strides = [1, 1]} : vector<2x128xf32> to vector<2x32xf32>
    %23 = vector.extract_strided_slice %21 {offsets = [0, 32], sizes = [2, 32], strides = [1, 1]} : vector<2x128xf32> to vector<2x32xf32>
    %24 = vector.extract_strided_slice %21 {offsets = [0, 64], sizes = [2, 32], strides = [1, 1]} : vector<2x128xf32> to vector<2x32xf32>
    %cst_16 = arith.constant 2.000000e+00 : f32
    %25 = vector.broadcast %cst_16 : f32 to vector<2x32xf32>
    %26 = arith.mulf %25, %24 : vector<2x32xf32>
    %cst_17 = arith.constant 1.000000e+00 : f32
    %27 = vector.broadcast %cst_17 : f32 to vector<2x32xf32>
    %28 = arith.subf %26, %27 : vector<2x32xf32>
    %29 = vector.extract_strided_slice %21 {offsets = [0, 96], sizes = [2, 32], strides = [1, 1]} : vector<2x128xf32> to vector<2x32xf32>
    %30 = arith.mulf %23, %10 : vector<2x32xf32>
    %31 = arith.mulf %22, %28 : vector<2x32xf32>
    %32 = arith.addf %30, %31 : vector<2x32xf32>
    %cst_18 = arith.constant 2.000000e+00 : f32
    %33 = vector.broadcast %cst_18 : f32 to vector<2x32xf32>
    %34 = arith.mulf %33, %32 : vector<2x32xf32>
    %35 = arith.negf %34 : vector<2x32xf32>
    %36 = math.exp %35 : vector<2x32xf32>
    %cst_19 = arith.constant 1.000000e+00 : f32
    %37 = vector.broadcast %cst_19 : f32 to vector<2x32xf32>
    %38 = arith.addf %37, %36 : vector<2x32xf32>
    %39 = arith.divf %37, %38 : vector<2x32xf32>
    %cst_20 = arith.constant 2.000000e+00 : f32
    %40 = vector.broadcast %cst_20 : f32 to vector<2x32xf32>
    %41 = arith.mulf %40, %39 : vector<2x32xf32>
    %cst_21 = arith.constant 1.000000e+00 : f32
    %42 = vector.broadcast %cst_21 : f32 to vector<2x32xf32>
    %43 = arith.subf %41, %42 : vector<2x32xf32>
    %44 = arith.mulf %29, %43 : vector<2x32xf32>
    %45 = arith.truncf %44 : vector<2x32xf32> to vector<2x32xbf16>
    %c0_22 = arith.constant 0 : index
    %c0_23 = arith.constant 0 : index
    %46 = vector.load %arg23[%c0_22, %c0_23] : memref<16x32xbf16, #tpu.memory_space<vmem>>, vector<2x32xbf16>
    tpu.vector_store %arg23[%c0_22, %c0_23], %45 {strides = array<i32>} : memref<16x32xbf16, #tpu.memory_space<vmem>>, vector<2x32xbf16>,
    %c2 = arith.constant 2 : index
    %c0_24 = arith.constant 0 : index
    %47 = vector.load %arg22[%c2, %c0_24] : memref<16x128xbf16, #tpu.memory_space<vmem>>, vector<2x128xbf16>
    %48 = arith.extf %47 : vector<2x128xbf16> to vector<2x128xf32>
    %49 = arith.truncf %44 : vector<2x32xf32> to vector<2x32xbf16>
    %c0_25 = arith.constant 0 : index
    %c0_26 = arith.constant 0 : index
    %50 = vector.load %arg5[%c0_25, %c0_26] : memref<32x128xbf16, #tpu.memory_space<vmem>>, vector<32x128xbf16>
    %cst_27 = arith.constant dense<0.000000e+00> : vector<2x128xf32>
    %51 = tpu.matmul %49, %50, %cst_27 {dimension_numbers = #tpu.dot_dimension_numbers<[1], [0], [0], [1], [0, 0, 1, 1], [], []>} : vector<2x32xbf16>, vector<32x128xbf16>, vector<2x128xf32> -> vector<2x128xf32>
    %52 = arith.addf %48, %51 : vector<2x128xf32>
    %53 = arith.negf %52 : vector<2x128xf32>
    %54 = math.exp %53 : vector<2x128xf32>
    %cst_28 = arith.constant 1.000000e+00 : f32
    %55 = vector.broadcast %cst_28 : f32 to vector<2x128xf32>
    %56 = arith.addf %55, %54 : vector<2x128xf32>
    %57 = arith.divf %55, %56 : vector<2x128xf32>
    %58 = vector.extract_strided_slice %57 {offsets = [0, 0], sizes = [2, 32], strides = [1, 1]} : vector<2x128xf32> to vector<2x32xf32>
    %59 = vector.extract_strided_slice %57 {offsets = [0, 32], sizes = [2, 32], strides = [1, 1]} : vector<2x128xf32> to vector<2x32xf32>
    %60 = vector.extract_strided_slice %57 {offsets = [0, 64], sizes = [2, 32], strides = [1, 1]} : vector<2x128xf32> to vector<2x32xf32>
    %cst_29 = arith.constant 2.000000e+00 : f32
    %61 = vector.broadcast %cst_29 : f32 to vector<2x32xf32>
    %62 = arith.mulf %61, %60 : vector<2x32xf32>
    %cst_30 = arith.constant 1.000000e+00 : f32
    %63 = vector.broadcast %cst_30 : f32 to vector<2x32xf32>
    %64 = arith.subf %62, %63 : vector<2x32xf32>
    %65 = vector.extract_strided_slice %57 {offsets = [0, 96], sizes = [2, 32], strides = [1, 1]} : vector<2x128xf32> to vector<2x32xf32>
    %66 = arith.mulf %59, %32 : vector<2x32xf32>
    %67 = arith.mulf %58, %64 : vector<2x32xf32>
    %68 = arith.addf %66, %67 : vector<2x32xf32>
    %cst_31 = arith.constant 2.000000e+00 : f32
    %69 = vector.broadcast %cst_31 : f32 to vector<2x32xf32>
    %70 = arith.mulf %69, %68 : vector<2x32xf32>
    %71 = arith.negf %70 : vector<2x32xf32>
    %72 = math.exp %71 : vector<2x32xf32>
    %cst_32 = arith.constant 1.000000e+00 : f32
    %73 = vector.broadcast %cst_32 : f32 to vector<2x32xf32>
    %74 = arith.addf %73, %72 : vector<2x32xf32>
    %75 = arith.divf %73, %74 : vector<2x32xf32>
    %cst_33 = arith.constant 2.000000e+00 : f32
    %76 = vector.broadcast %cst_33 : f32 to vector<2x32xf32>
    %77 = arith.mulf %76, %75 : vector<2x32xf32>
    %cst_34 = arith.constant 1.000000e+00 : f32
    %78 = vector.broadcast %cst_34 : f32 to vector<2x32xf32>
    %79 = arith.subf %77, %78 : vector<2x32xf32>
    %80 = arith.mulf %65, %79 : vector<2x32xf32>
    %81 = arith.truncf %80 : vector<2x32xf32> to vector<2x32xbf16>
    %c2_35 = arith.constant 2 : index
    %c0_36 = arith.constant 0 : index
    %82 = vector.load %arg23[%c2_35, %c0_36] : memref<16x32xbf16, #tpu.memory_space<vmem>>, vector<2x32xbf16>
    tpu.vector_store %arg23[%c2_35, %c0_36], %81 {strides = array<i32>} : memref<16x32xbf16, #tpu.memory_space<vmem>>, vector<2x32xbf16>,
    %c4 = arith.constant 4 : index
    %c0_37 = arith.constant 0 : index
    %83 = vector.load %arg22[%c4, %c0_37] : memref<16x128xbf16, #tpu.memory_space<vmem>>, vector<2x128xbf16>
    %84 = arith.extf %83 : vector<2x128xbf16> to vector<2x128xf32>
    %85 = arith.truncf %80 : vector<2x32xf32> to vector<2x32xbf16>
    %c0_38 = arith.constant 0 : index
    %c0_39 = arith.constant 0 : index
    %86 = vector.load %arg5[%c0_38, %c0_39] : memref<32x128xbf16, #tpu.memory_space<vmem>>, vector<32x128xbf16>
    %cst_40 = arith.constant dense<0.000000e+00> : vector<2x128xf32>
    %87 = tpu.matmul %85, %86, %cst_40 {dimension_numbers = #tpu.dot_dimension_numbers<[1], [0], [0], [1], [0, 0, 1, 1], [], []>} : vector<2x32xbf16>, vector<32x128xbf16>, vector<2x128xf32> -> vector<2x128xf32>
    %88 = arith.addf %84, %87 : vector<2x128xf32>
    %89 = arith.negf %88 : vector<2x128xf32>
    %90 = math.exp %89 : vector<2x128xf32>
    %cst_41 = arith.constant 1.000000e+00 : f32
    %91 = vector.broadcast %cst_41 : f32 to vector<2x128xf32>
    %92 = arith.addf %91, %90 : vector<2x128xf32>
    %93 = arith.divf %91, %92 : vector<2x128xf32>
    %94 = vector.extract_strided_slice %93 {offsets = [0, 0], sizes = [2, 32], strides = [1, 1]} : vector<2x128xf32> to vector<2x32xf32>
    %95 = vector.extract_strided_slice %93 {offsets = [0, 32], sizes = [2, 32], strides = [1, 1]} : vector<2x128xf32> to vector<2x32xf32>
    %96 = vector.extract_strided_slice %93 {offsets = [0, 64], sizes = [2, 32], strides = [1, 1]} : vector<2x128xf32> to vector<2x32xf32>
    %cst_42 = arith.constant 2.000000e+00 : f32
    %97 = vector.broadcast %cst_42 : f32 to vector<2x32xf32>
    %98 = arith.mulf %97, %96 : vector<2x32xf32>
    %cst_43 = arith.constant 1.000000e+00 : f32
    %99 = vector.broadcast %cst_43 : f32 to vector<2x32xf32>
    %100 = arith.subf %98, %99 : vector<2x32xf32>
    %101 = vector.extract_strided_slice %93 {offsets = [0, 96], sizes = [2, 32], strides = [1, 1]} : vector<2x128xf32> to vector<2x32xf32>
    %102 = arith.mulf %95, %68 : vector<2x32xf32>
    %103 = arith.mulf %94, %100 : vector<2x32xf32>
    %104 = arith.addf %102, %103 : vector<2x32xf32>
    %cst_44 = arith.constant 2.000000e+00 : f32
    %105 = vector.broadcast %cst_44 : f32 to vector<2x32xf32>
    %106 = arith.mulf %105, %104 : vector<2x32xf32>
    %107 = arith.negf %106 : vector<2x32xf32>
    %108 = math.exp %107 : vector<2x32xf32>
    %cst_45 = arith.constant 1.000000e+00 : f32
    %109 = vector.broadcast %cst_45 : f32 to vector<2x32xf32>
    %110 = arith.addf %109, %108 : vector<2x32xf32>
    %111 = arith.divf %109, %110 : vector<2x32xf32>
    %cst_46 = arith.constant 2.000000e+00 : f32
    %112 = vector.broadcast %cst_46 : f32 to vector<2x32xf32>
    %113 = arith.mulf %112, %111 : vector<2x32xf32>
    %cst_47 = arith.constant 1.000000e+00 : f32
    %114 = vector.broadcast %cst_47 : f32 to vector<2x32xf32>
    %115 = arith.subf %113, %114 : vector<2x32xf32>
    %116 = arith.mulf %101, %115 : vector<2x32xf32>
    %117 = arith.truncf %116 : vector<2x32xf32> to vector<2x32xbf16>
    %c4_48 = arith.constant 4 : index
    %c0_49 = arith.constant 0 : index
    %118 = vector.load %arg23[%c4_48, %c0_49] : memref<16x32xbf16, #tpu.memory_space<vmem>>, vector<2x32xbf16>
    tpu.vector_store %arg23[%c4_48, %c0_49], %117 {strides = array<i32>} : memref<16x32xbf16, #tpu.memory_space<vmem>>, vector<2x32xbf16>,
    %c6 = arith.constant 6 : index
    %c0_50 = arith.constant 0 : index
    %119 = vector.load %arg22[%c6, %c0_50] : memref<16x128xbf16, #tpu.memory_space<vmem>>, vector<2x128xbf16>
    %120 = arith.extf %119 : vector<2x128xbf16> to vector<2x128xf32>
    %121 = arith.truncf %116 : vector<2x32xf32> to vector<2x32xbf16>
    %c0_51 = arith.constant 0 : index
    %c0_52 = arith.constant 0 : index
    %122 = vector.load %arg5[%c0_51, %c0_52] : memref<32x128xbf16, #tpu.memory_space<vmem>>, vector<32x128xbf16>
    %cst_53 = arith.constant dense<0.000000e+00> : vector<2x128xf32>
    %123 = tpu.matmul %121, %122, %cst_53 {dimension_numbers = #tpu.dot_dimension_numbers<[1], [0], [0], [1], [0, 0, 1, 1], [], []>} : vector<2x32xbf16>, vector<32x128xbf16>, vector<2x128xf32> -> vector<2x128xf32>
    %124 = arith.addf %120, %123 : vector<2x128xf32>
    %125 = arith.negf %124 : vector<2x128xf32>
    %126 = math.exp %125 : vector<2x128xf32>
    %cst_54 = arith.constant 1.000000e+00 : f32
    %127 = vector.broadcast %cst_54 : f32 to vector<2x128xf32>
    %128 = arith.addf %127, %126 : vector<2x128xf32>
    %129 = arith.divf %127, %128 : vector<2x128xf32>
    %130 = vector.extract_strided_slice %129 {offsets = [0, 0], sizes = [2, 32], strides = [1, 1]} : vector<2x128xf32> to vector<2x32xf32>
    %131 = vector.extract_strided_slice %129 {offsets = [0, 32], sizes = [2, 32], strides = [1, 1]} : vector<2x128xf32> to vector<2x32xf32>
    %132 = vector.extract_strided_slice %129 {offsets = [0, 64], sizes = [2, 32], strides = [1, 1]} : vector<2x128xf32> to vector<2x32xf32>
    %cst_55 = arith.constant 2.000000e+00 : f32
    %133 = vector.broadcast %cst_55 : f32 to vector<2x32xf32>
    %134 = arith.mulf %133, %132 : vector<2x32xf32>
    %cst_56 = arith.constant 1.000000e+00 : f32
    %135 = vector.broadcast %cst_56 : f32 to vector<2x32xf32>
    %136 = arith.subf %134, %135 : vector<2x32xf32>
    %137 = vector.extract_strided_slice %129 {offsets = [0, 96], sizes = [2, 32], strides = [1, 1]} : vector<2x128xf32> to vector<2x32xf32>
    %138 = arith.mulf %131, %104 : vector<2x32xf32>
    %139 = arith.mulf %130, %136 : vector<2x32xf32>
    %140 = arith.addf %138, %139 : vector<2x32xf32>
    %cst_57 = arith.constant 2.000000e+00 : f32
    %141 = vector.broadcast %cst_57 : f32 to vector<2x32xf32>
    %142 = arith.mulf %141, %140 : vector<2x32xf32>
    %143 = arith.negf %142 : vector<2x32xf32>
    %144 = math.exp %143 : vector<2x32xf32>
    %cst_58 = arith.constant 1.000000e+00 : f32
    %145 = vector.broadcast %cst_58 : f32 to vector<2x32xf32>
    %146 = arith.addf %145, %144 : vector<2x32xf32>
    %147 = arith.divf %145, %146 : vector<2x32xf32>
    %cst_59 = arith.constant 2.000000e+00 : f32
    %148 = vector.broadcast %cst_59 : f32 to vector<2x32xf32>
    %149 = arith.mulf %148, %147 : vector<2x32xf32>
    %cst_60 = arith.constant 1.000000e+00 : f32
    %150 = vector.broadcast %cst_60 : f32 to vector<2x32xf32>
    %151 = arith.subf %149, %150 : vector<2x32xf32>
    %152 = arith.mulf %137, %151 : vector<2x32xf32>
    %153 = arith.truncf %152 : vector<2x32xf32> to vector<2x32xbf16>
    %c6_61 = arith.constant 6 : index
    %c0_62 = arith.constant 0 : index
    %154 = vector.load %arg23[%c6_61, %c0_62] : memref<16x32xbf16, #tpu.memory_space<vmem>>, vector<2x32xbf16>
    tpu.vector_store %arg23[%c6_61, %c0_62], %153 {strides = array<i32>} : memref<16x32xbf16, #tpu.memory_space<vmem>>, vector<2x32xbf16>,
    %c8 = arith.constant 8 : index
    %c0_63 = arith.constant 0 : index
    %155 = vector.load %arg22[%c8, %c0_63] : memref<16x128xbf16, #tpu.memory_space<vmem>>, vector<2x128xbf16>
    %156 = arith.extf %155 : vector<2x128xbf16> to vector<2x128xf32>
    %157 = arith.truncf %152 : vector<2x32xf32> to vector<2x32xbf16>
    %c0_64 = arith.constant 0 : index
    %c0_65 = arith.constant 0 : index
    %158 = vector.load %arg5[%c0_64, %c0_65] : memref<32x128xbf16, #tpu.memory_space<vmem>>, vector<32x128xbf16>
    %cst_66 = arith.constant dense<0.000000e+00> : vector<2x128xf32>
    %159 = tpu.matmul %157, %158, %cst_66 {dimension_numbers = #tpu.dot_dimension_numbers<[1], [0], [0], [1], [0, 0, 1, 1], [], []>} : vector<2x32xbf16>, vector<32x128xbf16>, vector<2x128xf32> -> vector<2x128xf32>
    %160 = arith.addf %156, %159 : vector<2x128xf32>
    %161 = arith.negf %160 : vector<2x128xf32>
    %162 = math.exp %161 : vector<2x128xf32>
    %cst_67 = arith.constant 1.000000e+00 : f32
    %163 = vector.broadcast %cst_67 : f32 to vector<2x128xf32>
    %164 = arith.addf %163, %162 : vector<2x128xf32>
    %165 = arith.divf %163, %164 : vector<2x128xf32>
    %166 = vector.extract_strided_slice %165 {offsets = [0, 0], sizes = [2, 32], strides = [1, 1]} : vector<2x128xf32> to vector<2x32xf32>
    %167 = vector.extract_strided_slice %165 {offsets = [0, 32], sizes = [2, 32], strides = [1, 1]} : vector<2x128xf32> to vector<2x32xf32>
    %168 = vector.extract_strided_slice %165 {offsets = [0, 64], sizes = [2, 32], strides = [1, 1]} : vector<2x128xf32> to vector<2x32xf32>
    %cst_68 = arith.constant 2.000000e+00 : f32
    %169 = vector.broadcast %cst_68 : f32 to vector<2x32xf32>
    %170 = arith.mulf %169, %168 : vector<2x32xf32>
    %cst_69 = arith.constant 1.000000e+00 : f32
    %171 = vector.broadcast %cst_69 : f32 to vector<2x32xf32>
    %172 = arith.subf %170, %171 : vector<2x32xf32>
    %173 = vector.extract_strided_slice %165 {offsets = [0, 96], sizes = [2, 32], strides = [1, 1]} : vector<2x128xf32> to vector<2x32xf32>
    %174 = arith.mulf %167, %140 : vector<2x32xf32>
    %175 = arith.mulf %166, %172 : vector<2x32xf32>
    %176 = arith.addf %174, %175 : vector<2x32xf32>
    %cst_70 = arith.constant 2.000000e+00 : f32
    %177 = vector.broadcast %cst_70 : f32 to vector<2x32xf32>
    %178 = arith.mulf %177, %176 : vector<2x32xf32>
    %179 = arith.negf %178 : vector<2x32xf32>
    %180 = math.exp %179 : vector<2x32xf32>
    %cst_71 = arith.constant 1.000000e+00 : f32
    %181 = vector.broadcast %cst_71 : f32 to vector<2x32xf32>
    %182 = arith.addf %181, %180 : vector<2x32xf32>
    %183 = arith.divf %181, %182 : vector<2x32xf32>
    %cst_72 = arith.constant 2.000000e+00 : f32
    %184 = vector.broadcast %cst_72 : f32 to vector<2x32xf32>
    %185 = arith.mulf %184, %183 : vector<2x32xf32>
    %cst_73 = arith.constant 1.000000e+00 : f32
    %186 = vector.broadcast %cst_73 : f32 to vector<2x32xf32>
    %187 = arith.subf %185, %186 : vector<2x32xf32>
    %188 = arith.mulf %173, %187 : vector<2x32xf32>
    %189 = arith.truncf %188 : vector<2x32xf32> to vector<2x32xbf16>
    %c8_74 = arith.constant 8 : index
    %c0_75 = arith.constant 0 : index
    %190 = vector.load %arg23[%c8_74, %c0_75] : memref<16x32xbf16, #tpu.memory_space<vmem>>, vector<2x32xbf16>
    tpu.vector_store %arg23[%c8_74, %c0_75], %189 {strides = array<i32>} : memref<16x32xbf16, #tpu.memory_space<vmem>>, vector<2x32xbf16>,
    %c10 = arith.constant 10 : index
    %c0_76 = arith.constant 0 : index
    %191 = vector.load %arg22[%c10, %c0_76] : memref<16x128xbf16, #tpu.memory_space<vmem>>, vector<2x128xbf16>
    %192 = arith.extf %191 : vector<2x128xbf16> to vector<2x128xf32>
    %193 = arith.truncf %188 : vector<2x32xf32> to vector<2x32xbf16>
    %c0_77 = arith.constant 0 : index
    %c0_78 = arith.constant 0 : index
    %194 = vector.load %arg5[%c0_77, %c0_78] : memref<32x128xbf16, #tpu.memory_space<vmem>>, vector<32x128xbf16>
    %cst_79 = arith.constant dense<0.000000e+00> : vector<2x128xf32>
    %195 = tpu.matmul %193, %194, %cst_79 {dimension_numbers = #tpu.dot_dimension_numbers<[1], [0], [0], [1], [0, 0, 1, 1], [], []>} : vector<2x32xbf16>, vector<32x128xbf16>, vector<2x128xf32> -> vector<2x128xf32>
    %196 = arith.addf %192, %195 : vector<2x128xf32>
    %197 = arith.negf %196 : vector<2x128xf32>
    %198 = math.exp %197 : vector<2x128xf32>
    %cst_80 = arith.constant 1.000000e+00 : f32
    %199 = vector.broadcast %cst_80 : f32 to vector<2x128xf32>
    %200 = arith.addf %199, %198 : vector<2x128xf32>
    %201 = arith.divf %199, %200 : vector<2x128xf32>
    %202 = vector.extract_strided_slice %201 {offsets = [0, 0], sizes = [2, 32], strides = [1, 1]} : vector<2x128xf32> to vector<2x32xf32>
    %203 = vector.extract_strided_slice %201 {offsets = [0, 32], sizes = [2, 32], strides = [1, 1]} : vector<2x128xf32> to vector<2x32xf32>
    %204 = vector.extract_strided_slice %201 {offsets = [0, 64], sizes = [2, 32], strides = [1, 1]} : vector<2x128xf32> to vector<2x32xf32>
    %cst_81 = arith.constant 2.000000e+00 : f32
    %205 = vector.broadcast %cst_81 : f32 to vector<2x32xf32>
    %206 = arith.mulf %205, %204 : vector<2x32xf32>
    %cst_82 = arith.constant 1.000000e+00 : f32
    %207 = vector.broadcast %cst_82 : f32 to vector<2x32xf32>
    %208 = arith.subf %206, %207 : vector<2x32xf32>
    %209 = vector.extract_strided_slice %201 {offsets = [0, 96], sizes = [2, 32], strides = [1, 1]} : vector<2x128xf32> to vector<2x32xf32>
    %210 = arith.mulf %203, %176 : vector<2x32xf32>
    %211 = arith.mulf %202, %208 : vector<2x32xf32>
    %212 = arith.addf %210, %211 : vector<2x32xf32>
    %cst_83 = arith.constant 2.000000e+00 : f32
    %213 = vector.broadcast %cst_83 : f32 to vector<2x32xf32>
    %214 = arith.mulf %213, %212 : vector<2x32xf32>
    %215 = arith.negf %214 : vector<2x32xf32>
    %216 = math.exp %215 : vector<2x32xf32>
    %cst_84 = arith.constant 1.000000e+00 : f32
    %217 = vector.broadcast %cst_84 : f32 to vector<2x32xf32>
    %218 = arith.addf %217, %216 : vector<2x32xf32>
    %219 = arith.divf %217, %218 : vector<2x32xf32>
    %cst_85 = arith.constant 2.000000e+00 : f32
    %220 = vector.broadcast %cst_85 : f32 to vector<2x32xf32>
    %221 = arith.mulf %220, %219 : vector<2x32xf32>
    %cst_86 = arith.constant 1.000000e+00 : f32
    %222 = vector.broadcast %cst_86 : f32 to vector<2x32xf32>
    %223 = arith.subf %221, %222 : vector<2x32xf32>
    %224 = arith.mulf %209, %223 : vector<2x32xf32>
    %225 = arith.truncf %224 : vector<2x32xf32> to vector<2x32xbf16>
    %c10_87 = arith.constant 10 : index
    %c0_88 = arith.constant 0 : index
    %226 = vector.load %arg23[%c10_87, %c0_88] : memref<16x32xbf16, #tpu.memory_space<vmem>>, vector<2x32xbf16>
    tpu.vector_store %arg23[%c10_87, %c0_88], %225 {strides = array<i32>} : memref<16x32xbf16, #tpu.memory_space<vmem>>, vector<2x32xbf16>,
    %c12 = arith.constant 12 : index
    %c0_89 = arith.constant 0 : index
    %227 = vector.load %arg22[%c12, %c0_89] : memref<16x128xbf16, #tpu.memory_space<vmem>>, vector<2x128xbf16>
    %228 = arith.extf %227 : vector<2x128xbf16> to vector<2x128xf32>
    %229 = arith.truncf %224 : vector<2x32xf32> to vector<2x32xbf16>
    %c0_90 = arith.constant 0 : index
    %c0_91 = arith.constant 0 : index
    %230 = vector.load %arg5[%c0_90, %c0_91] : memref<32x128xbf16, #tpu.memory_space<vmem>>, vector<32x128xbf16>
    %cst_92 = arith.constant dense<0.000000e+00> : vector<2x128xf32>
    %231 = tpu.matmul %229, %230, %cst_92 {dimension_numbers = #tpu.dot_dimension_numbers<[1], [0], [0], [1], [0, 0, 1, 1], [], []>} : vector<2x32xbf16>, vector<32x128xbf16>, vector<2x128xf32> -> vector<2x128xf32>
    %232 = arith.addf %228, %231 : vector<2x128xf32>
    %233 = arith.negf %232 : vector<2x128xf32>
    %234 = math.exp %233 : vector<2x128xf32>
    %cst_93 = arith.constant 1.000000e+00 : f32
    %235 = vector.broadcast %cst_93 : f32 to vector<2x128xf32>
    %236 = arith.addf %235, %234 : vector<2x128xf32>
    %237 = arith.divf %235, %236 : vector<2x128xf32>
    %238 = vector.extract_strided_slice %237 {offsets = [0, 0], sizes = [2, 32], strides = [1, 1]} : vector<2x128xf32> to vector<2x32xf32>
    %239 = vector.extract_strided_slice %237 {offsets = [0, 32], sizes = [2, 32], strides = [1, 1]} : vector<2x128xf32> to vector<2x32xf32>
    %240 = vector.extract_strided_slice %237 {offsets = [0, 64], sizes = [2, 32], strides = [1, 1]} : vector<2x128xf32> to vector<2x32xf32>
    %cst_94 = arith.constant 2.000000e+00 : f32
    %241 = vector.broadcast %cst_94 : f32 to vector<2x32xf32>
    %242 = arith.mulf %241, %240 : vector<2x32xf32>
    %cst_95 = arith.constant 1.000000e+00 : f32
    %243 = vector.broadcast %cst_95 : f32 to vector<2x32xf32>
    %244 = arith.subf %242, %243 : vector<2x32xf32>
    %245 = vector.extract_strided_slice %237 {offsets = [0, 96], sizes = [2, 32], strides = [1, 1]} : vector<2x128xf32> to vector<2x32xf32>
    %246 = arith.mulf %239, %212 : vector<2x32xf32>
    %247 = arith.mulf %238, %244 : vector<2x32xf32>
    %248 = arith.addf %246, %247 : vector<2x32xf32>
    %cst_96 = arith.constant 2.000000e+00 : f32
    %249 = vector.broadcast %cst_96 : f32 to vector<2x32xf32>
    %250 = arith.mulf %249, %248 : vector<2x32xf32>
    %251 = arith.negf %250 : vector<2x32xf32>
    %252 = math.exp %251 : vector<2x32xf32>
    %cst_97 = arith.constant 1.000000e+00 : f32
    %253 = vector.broadcast %cst_97 : f32 to vector<2x32xf32>
    %254 = arith.addf %253, %252 : vector<2x32xf32>
    %255 = arith.divf %253, %254 : vector<2x32xf32>
    %cst_98 = arith.constant 2.000000e+00 : f32
    %256 = vector.broadcast %cst_98 : f32 to vector<2x32xf32>
    %257 = arith.mulf %256, %255 : vector<2x32xf32>
    %cst_99 = arith.constant 1.000000e+00 : f32
    %258 = vector.broadcast %cst_99 : f32 to vector<2x32xf32>
    %259 = arith.subf %257, %258 : vector<2x32xf32>
    %260 = arith.mulf %245, %259 : vector<2x32xf32>
    %261 = arith.truncf %260 : vector<2x32xf32> to vector<2x32xbf16>
    %c12_100 = arith.constant 12 : index
    %c0_101 = arith.constant 0 : index
    %262 = vector.load %arg23[%c12_100, %c0_101] : memref<16x32xbf16, #tpu.memory_space<vmem>>, vector<2x32xbf16>
    tpu.vector_store %arg23[%c12_100, %c0_101], %261 {strides = array<i32>} : memref<16x32xbf16, #tpu.memory_space<vmem>>, vector<2x32xbf16>,
    %c14 = arith.constant 14 : index
    %c0_102 = arith.constant 0 : index
    %263 = vector.load %arg22[%c14, %c0_102] : memref<16x128xbf16, #tpu.memory_space<vmem>>, vector<2x128xbf16>
    %264 = arith.extf %263 : vector<2x128xbf16> to vector<2x128xf32>
    %265 = arith.truncf %260 : vector<2x32xf32> to vector<2x32xbf16>
    %c0_103 = arith.constant 0 : index
    %c0_104 = arith.constant 0 : index
    %266 = vector.load %arg5[%c0_103, %c0_104] : memref<32x128xbf16, #tpu.memory_space<vmem>>, vector<32x128xbf16>
    %cst_105 = arith.constant dense<0.000000e+00> : vector<2x128xf32>
    %267 = tpu.matmul %265, %266, %cst_105 {dimension_numbers = #tpu.dot_dimension_numbers<[1], [0], [0], [1], [0, 0, 1, 1], [], []>} : vector<2x32xbf16>, vector<32x128xbf16>, vector<2x128xf32> -> vector<2x128xf32>
    %268 = arith.addf %264, %267 : vector<2x128xf32>
    %269 = arith.negf %268 : vector<2x128xf32>
    %270 = math.exp %269 : vector<2x128xf32>
    %cst_106 = arith.constant 1.000000e+00 : f32
    %271 = vector.broadcast %cst_106 : f32 to vector<2x128xf32>
    %272 = arith.addf %271, %270 : vector<2x128xf32>
    %273 = arith.divf %271, %272 : vector<2x128xf32>
    %274 = vector.extract_strided_slice %273 {offsets = [0, 0], sizes = [2, 32], strides = [1, 1]} : vector<2x128xf32> to vector<2x32xf32>
    %275 = vector.extract_strided_slice %273 {offsets = [0, 32], sizes = [2, 32], strides = [1, 1]} : vector<2x128xf32> to vector<2x32xf32>
    %276 = vector.extract_strided_slice %273 {offsets = [0, 64], sizes = [2, 32], strides = [1, 1]} : vector<2x128xf32> to vector<2x32xf32>
    %cst_107 = arith.constant 2.000000e+00 : f32
    %277 = vector.broadcast %cst_107 : f32 to vector<2x32xf32>
    %278 = arith.mulf %277, %276 : vector<2x32xf32>
    %cst_108 = arith.constant 1.000000e+00 : f32
    %279 = vector.broadcast %cst_108 : f32 to vector<2x32xf32>
    %280 = arith.subf %278, %279 : vector<2x32xf32>
    %281 = vector.extract_strided_slice %273 {offsets = [0, 96], sizes = [2, 32], strides = [1, 1]} : vector<2x128xf32> to vector<2x32xf32>
    %282 = arith.mulf %275, %248 : vector<2x32xf32>
    %283 = arith.mulf %274, %280 : vector<2x32xf32>
    %284 = arith.addf %282, %283 : vector<2x32xf32>
    %cst_109 = arith.constant 2.000000e+00 : f32
    %285 = vector.broadcast %cst_109 : f32 to vector<2x32xf32>
    %286 = arith.mulf %285, %284 : vector<2x32xf32>
    %287 = arith.negf %286 : vector<2x32xf32>
    %288 = math.exp %287 : vector<2x32xf32>
    %cst_110 = arith.constant 1.000000e+00 : f32
    %289 = vector.broadcast %cst_110 : f32 to vector<2x32xf32>
    %290 = arith.addf %289, %288 : vector<2x32xf32>
    %291 = arith.divf %289, %290 : vector<2x32xf32>
    %cst_111 = arith.constant 2.000000e+00 : f32
    %292 = vector.broadcast %cst_111 : f32 to vector<2x32xf32>
    %293 = arith.mulf %292, %291 : vector<2x32xf32>
    %cst_112 = arith.constant 1.000000e+00 : f32
    %294 = vector.broadcast %cst_112 : f32 to vector<2x32xf32>
    %295 = arith.subf %293, %294 : vector<2x32xf32>
    %296 = arith.mulf %281, %295 : vector<2x32xf32>
    %297 = arith.truncf %296 : vector<2x32xf32> to vector<2x32xbf16>
    %c14_113 = arith.constant 14 : index
    %c0_114 = arith.constant 0 : index
    %298 = vector.load %arg23[%c14_113, %c0_114] : memref<16x32xbf16, #tpu.memory_space<vmem>>, vector<2x32xbf16>
    tpu.vector_store %arg23[%c14_113, %c0_114], %297 {strides = array<i32>} : memref<16x32xbf16, #tpu.memory_space<vmem>>, vector<2x32xbf16>,
    %c0_115 = arith.constant 0 : index
    %c0_116 = arith.constant 0 : index
    %299 = vector.load %arg23[%c0_115, %c0_116] : memref<16x32xbf16, #tpu.memory_space<vmem>>, vector<16x32xbf16>
    %c0_117 = arith.constant 0 : index
    %c0_118 = arith.constant 0 : index
    %300 = vector.load %arg7[%c0_117, %c0_118] : memref<32x256xbf16, #tpu.memory_space<vmem>>, vector<32x256xbf16>
    %cst_119 = arith.constant dense<0.000000e+00> : vector<16x256xf32>
    %301 = tpu.matmul %299, %300, %cst_119 {dimension_numbers = #tpu.dot_dimension_numbers<[1], [0], [0], [1], [0, 0, 1, 1], [], []>} : vector<16x32xbf16>, vector<32x256xbf16>, vector<16x256xf32> -> vector<16x256xf32>
    %c0_120 = arith.constant 0 : index
    %c0_121 = arith.constant 0 : index
    %302 = vector.load %arg8[%c0_120, %c0_121] : memref<1x256xf32, #tpu.memory_space<vmem>>, vector<1x256xf32>
    %303 = vector.broadcast %302 : vector<1x256xf32> to vector<16x256xf32>
    %304 = arith.addf %301, %303 : vector<16x256xf32>
    %305 = math.tanh %304 : vector<16x256xf32>
    %c0_122 = arith.constant 0 : index
    %c0_123 = arith.constant 0 : index
    %306 = vector.load %arg9[%c0_122, %c0_123] : memref<1x256xf32, #tpu.memory_space<vmem>>, vector<1x256xf32>
    %307 = vector.broadcast %306 : vector<1x256xf32> to vector<16x256xf32>
    %308 = arith.mulf %305, %307 : vector<16x256xf32>
    %309 = vector.shape_cast %308 : vector<16x256xf32> to vector<8x2x256xf32>
    %cst_124 = arith.constant dense<0.000000e+00> : vector<8x2xf32>
    %310 = vector.multi_reduction <add>, %309, %cst_124 [2] : vector<8x2x256xf32> to vector<8x2xf32>
    %311 = vector.shape_cast %310 : vector<8x2xf32> to vector<8x2x1xf32>
    %cst_125 = arith.constant dense<0xFF800000> : vector<2x1xf32>
    %312 = vector.multi_reduction <maximumf>, %311, %cst_125 [0] : vector<8x2x1xf32> to vector<2x1xf32>
    %313 = vector.shape_cast %312 : vector<2x1xf32> to vector<1x2x1xf32>
    %314 = vector.broadcast %313 : vector<1x2x1xf32> to vector<8x2x1xf32>
    %315 = arith.subf %311, %314 : vector<8x2x1xf32>
    %316 = math.exp %315 : vector<8x2x1xf32>
    %cst_126 = arith.constant dense<0.000000e+00> : vector<2x1xf32>
    %317 = vector.multi_reduction <add>, %316, %cst_126 [0] : vector<8x2x1xf32> to vector<2x1xf32>
    %318 = vector.shape_cast %317 : vector<2x1xf32> to vector<1x2x1xf32>
    %319 = vector.broadcast %318 : vector<1x2x1xf32> to vector<8x2x1xf32>
    %320 = arith.divf %316, %319 : vector<8x2x1xf32>
    %c0_127 = arith.constant 0 : index
    %c0_128 = arith.constant 0 : index
    %c0_129 = arith.constant 0 : index
    %321 = vector.load %arg21[%c0_127, %c0_128, %c0_129] : memref<8x2x1xf32, #tpu.memory_space<vmem>>, vector<8x2x1xf32>
    tpu.vector_store %arg21[%c0_127, %c0_128, %c0_129], %320 {strides = array<i32>} : memref<8x2x1xf32, #tpu.memory_space<vmem>>, vector<8x2x1xf32>,
    %c0_130 = arith.constant 0 : index
    %c0_131 = arith.constant 0 : index
    %322 = vector.load %arg23[%c0_130, %c0_131] : memref<16x32xbf16, #tpu.memory_space<vmem>>, vector<16x32xbf16>
    %323 = arith.extf %322 : vector<16x32xbf16> to vector<16x32xf32>
    %324 = vector.shape_cast %323 : vector<16x32xf32> to vector<8x2x32xf32>
    %325 = vector.broadcast %320 : vector<8x2x1xf32> to vector<8x2x32xf32>
    %326 = arith.mulf %324, %325 : vector<8x2x32xf32>
    %cst_132 = arith.constant dense<0.000000e+00> : vector<2x32xf32>
    %327 = vector.multi_reduction <add>, %326, %cst_132 [0] : vector<8x2x32xf32> to vector<2x32xf32>
    %c0_133 = arith.constant 0 : index
    %c0_134 = arith.constant 0 : index
    %328 = vector.load %arg2[%c0_133, %c0_134] : memref<2x32xf32, #tpu.memory_space<vmem>>, vector<2x32xf32>
    %c0_135 = arith.constant 0 : index
    %c0_136 = arith.constant 0 : index
    %329 = vector.load %arg3[%c0_135, %c0_136] : memref<2x32xf32, #tpu.memory_space<vmem>>, vector<2x32xf32>
    %c0_137 = arith.constant 0 : index
    %c0_138 = arith.constant 0 : index
    %330 = vector.load %arg11[%c0_137, %c0_138] : memref<32x64xf32, #tpu.memory_space<vmem>>, vector<32x64xf32>
    %cst_139 = arith.constant dense<0.000000e+00> : vector<2x64xf32>
    %331 = tpu.matmul %329, %330, %cst_139 {dimension_numbers = #tpu.dot_dimension_numbers<[1], [0], [0], [1], [0, 0, 1, 1], [], []>} : vector<2x32xf32>, vector<32x64xf32>, vector<2x64xf32> -> vector<2x64xf32>
    %c0_140 = arith.constant 0 : index
    %c0_141 = arith.constant 0 : index
    %332 = vector.load %arg12[%c0_140, %c0_141] : memref<1x64xf32, #tpu.memory_space<vmem>>, vector<1x64xf32>
    %333 = vector.broadcast %332 : vector<1x64xf32> to vector<2x64xf32>
    %334 = arith.addf %331, %333 : vector<2x64xf32>
    %c0_142 = arith.constant 0 : index
    %c0_143 = arith.constant 0 : index
    %335 = vector.load %arg10[%c0_142, %c0_143] : memref<32x64xf32, #tpu.memory_space<vmem>>, vector<32x64xf32>
    %cst_144 = arith.constant dense<0.000000e+00> : vector<2x64xf32>
    %336 = tpu.matmul %328, %335, %cst_144 {dimension_numbers = #tpu.dot_dimension_numbers<[1], [0], [0], [1], [0, 0, 1, 1], [], []>} : vector<2x32xf32>, vector<32x64xf32>, vector<2x64xf32> -> vector<2x64xf32>
    %337 = arith.addf %336, %334 : vector<2x64xf32>
    %c0_145 = arith.constant 0 : index
    %c0_146 = arith.constant 0 : index
    %338 = vector.load %arg10[%c0_145, %c0_146] : memref<32x64xf32, #tpu.memory_space<vmem>>, vector<32x64xf32>
    %cst_147 = arith.constant dense<0.000000e+00> : vector<2x64xf32>
    %339 = tpu.matmul %327, %338, %cst_147 {dimension_numbers = #tpu.dot_dimension_numbers<[1], [0], [0], [1], [0, 0, 1, 1], [], []>} : vector<2x32xf32>, vector<32x64xf32>, vector<2x64xf32> -> vector<2x64xf32>
    %340 = arith.addf %339, %334 : vector<2x64xf32>
    %c0_148 = arith.constant 0 : index
    %c0_149 = arith.constant 0 : index
    %341 = vector.load %arg13[%c0_148, %c0_149] : memref<64x32xf32, #tpu.memory_space<vmem>>, vector<64x32xf32>
    %c0_150 = arith.constant 0 : index
    %c0_151 = arith.constant 0 : index
    %342 = vector.load %arg14[%c0_150, %c0_151] : memref<1x32xf32, #tpu.memory_space<vmem>>, vector<1x32xf32>
    %cst_152 = arith.constant dense<0.000000e+00> : vector<2x32xf32>
    %343 = tpu.matmul %337, %341, %cst_152 {dimension_numbers = #tpu.dot_dimension_numbers<[1], [0], [0], [1], [0, 0, 1, 1], [], []>} : vector<2x64xf32>, vector<64x32xf32>, vector<2x32xf32> -> vector<2x32xf32>
    %344 = vector.broadcast %342 : vector<1x32xf32> to vector<2x32xf32>
    %345 = arith.addf %343, %344 : vector<2x32xf32>
    %cst_153 = arith.constant 0.000000e+00 : f32
    %346 = vector.broadcast %cst_153 : f32 to vector<2x32xf32>
    %347 = arith.maximumf %345, %346 : vector<2x32xf32>
    %cst_154 = arith.constant dense<0.000000e+00> : vector<2x32xf32>
    %348 = tpu.matmul %340, %341, %cst_154 {dimension_numbers = #tpu.dot_dimension_numbers<[1], [0], [0], [1], [0, 0, 1, 1], [], []>} : vector<2x64xf32>, vector<64x32xf32>, vector<2x32xf32> -> vector<2x32xf32>
    %349 = vector.broadcast %342 : vector<1x32xf32> to vector<2x32xf32>
    %350 = arith.addf %348, %349 : vector<2x32xf32>
    %cst_155 = arith.constant 0.000000e+00 : f32
    %351 = vector.broadcast %cst_155 : f32 to vector<2x32xf32>
    %352 = arith.maximumf %350, %351 : vector<2x32xf32>
    %c0_156 = arith.constant 0 : index
    %c0_157 = arith.constant 0 : index
    %353 = vector.load %arg15[%c0_156, %c0_157] : memref<32x32xf32, #tpu.memory_space<vmem>>, vector<32x32xf32>
    %cst_158 = arith.constant dense<0.000000e+00> : vector<2x32xf32>
    %354 = tpu.matmul %352, %353, %cst_158 {dimension_numbers = #tpu.dot_dimension_numbers<[1], [0], [0], [1], [0, 0, 1, 1], [], []>} : vector<2x32xf32>, vector<32x32xf32>, vector<2x32xf32> -> vector<2x32xf32>
    %c0_159 = arith.constant 0 : index
    %c0_160 = arith.constant 0 : index
    %355 = vector.load %arg16[%c0_159, %c0_160] : memref<32x32xf32, #tpu.memory_space<vmem>>, vector<32x32xf32>
    %cst_161 = arith.constant dense<0.000000e+00> : vector<2x32xf32>
    %356 = tpu.matmul %347, %355, %cst_161 {dimension_numbers = #tpu.dot_dimension_numbers<[1], [0], [0], [1], [0, 0, 1, 1], [], []>} : vector<2x32xf32>, vector<32x32xf32>, vector<2x32xf32> -> vector<2x32xf32>
    %357 = arith.addf %354, %356 : vector<2x32xf32>
    %c0_162 = arith.constant 0 : index
    %c0_163 = arith.constant 0 : index
    %358 = vector.load %arg17[%c0_162, %c0_163] : memref<1x32xf32, #tpu.memory_space<vmem>>, vector<1x32xf32>
    %359 = vector.broadcast %358 : vector<1x32xf32> to vector<2x32xf32>
    %360 = arith.addf %357, %359 : vector<2x32xf32>
    %cst_164 = arith.constant 0.000000e+00 : f32
    %361 = vector.broadcast %cst_164 : f32 to vector<2x32xf32>
    %362 = arith.maximumf %360, %361 : vector<2x32xf32>
    %c0_165 = arith.constant 0 : index
    %c0_166 = arith.constant 0 : index
    %363 = vector.load %arg18[%c0_165, %c0_166] : memref<1x32xf32, #tpu.memory_space<vmem>>, vector<1x32xf32>
    %364 = vector.broadcast %363 : vector<1x32xf32> to vector<2x32xf32>
    %365 = arith.mulf %362, %364 : vector<2x32xf32>
    %cst_167 = arith.constant dense<0.000000e+00> : vector<2xf32>
    %366 = vector.multi_reduction <add>, %365, %cst_167 [1] : vector<2x32xf32> to vector<2xf32>
    %367 = vector.shape_cast %366 : vector<2xf32> to vector<2x1xf32>
    %c0_168 = arith.constant 0 : index
    %c0_169 = arith.constant 0 : index
    %368 = vector.load %arg19[%c0_168, %c0_169] : memref<1x1xf32, #tpu.memory_space<vmem>>, vector<1x1xf32>
    %369 = vector.broadcast %368 : vector<1x1xf32> to vector<2x1xf32>
    %370 = arith.addf %367, %369 : vector<2x1xf32>
    %c0_170 = arith.constant 0 : index
    %c0_171 = arith.constant 0 : index
    %371 = vector.load %arg20[%c0_170, %c0_171] : memref<2x1xf32, #tpu.memory_space<vmem>>, vector<2x1xf32>
    tpu.vector_store %arg20[%c0_170, %c0_171], %370 {strides = array<i32>} : memref<2x1xf32, #tpu.memory_space<vmem>>, vector<2x1xf32>,
    return
  }
  func.func @transform_0(%arg0: i32) -> (i32, i32, i32) {
    %c0_i32 = arith.constant 0 : i32
    %c0_i32_0 = arith.constant 0 : i32
    %c0_i32_1 = arith.constant 0 : i32
    return %c0_i32, %arg0, %c0_i32_0 : i32, i32, i32
  }
  func.func @transform_1(%arg0: i32) -> (i32, i32) {
    %c0_i32 = arith.constant 0 : i32
    %c0_i32_0 = arith.constant 0 : i32
    return %arg0, %c0_i32 : i32, i32
  }
  func.func @transform_2(%arg0: i32) -> (i32, i32) {
    %c0_i32 = arith.constant 0 : i32
    %c0_i32_0 = arith.constant 0 : i32
    return %arg0, %c0_i32 : i32, i32
  }
  func.func @transform_3(%arg0: i32) -> (i32, i32) {
    %c0_i32 = arith.constant 0 : i32
    %c0_i32_0 = arith.constant 0 : i32
    %c0_i32_1 = arith.constant 0 : i32
    return %c0_i32, %c0_i32_0 : i32, i32
  }
  func.func @transform_4(%arg0: i32) -> (i32, i32) {
    %c0_i32 = arith.constant 0 : i32
    %c0_i32_0 = arith.constant 0 : i32
    %c0_i32_1 = arith.constant 0 : i32
    return %c0_i32, %c0_i32_0 : i32, i32
  }
  func.func @transform_5(%arg0: i32) -> (i32, i32) {
    %c0_i32 = arith.constant 0 : i32
    %c0_i32_0 = arith.constant 0 : i32
    %c0_i32_1 = arith.constant 0 : i32
    return %c0_i32, %c0_i32_0 : i32, i32
  }
  func.func @transform_6(%arg0: i32) -> (i32, i32) {
    %c0_i32 = arith.constant 0 : i32
    %c0_i32_0 = arith.constant 0 : i32
    %c0_i32_1 = arith.constant 0 : i32
    return %c0_i32, %c0_i32_0 : i32, i32
  }
  func.func @transform_7(%arg0: i32) -> (i32, i32) {
    %c0_i32 = arith.constant 0 : i32
    %c0_i32_0 = arith.constant 0 : i32
    %c0_i32_1 = arith.constant 0 : i32
    return %c0_i32, %c0_i32_0 : i32, i32
  }
  func.func @transform_8(%arg0: i32) -> (i32, i32) {
    %c0_i32 = arith.constant 0 : i32
    %c0_i32_0 = arith.constant 0 : i32
    %c0_i32_1 = arith.constant 0 : i32
    return %c0_i32, %c0_i32_0 : i32, i32
  }
  func.func @transform_9(%arg0: i32) -> (i32, i32) {
    %c0_i32 = arith.constant 0 : i32
    %c0_i32_0 = arith.constant 0 : i32
    %c0_i32_1 = arith.constant 0 : i32
    return %c0_i32, %c0_i32_0 : i32, i32
  }
  func.func @transform_10(%arg0: i32) -> (i32, i32) {
    %c0_i32 = arith.constant 0 : i32
    %c0_i32_0 = arith.constant 0 : i32
    %c0_i32_1 = arith.constant 0 : i32
    return %c0_i32, %c0_i32_0 : i32, i32
  }
  func.func @transform_11(%arg0: i32) -> (i32, i32) {
    %c0_i32 = arith.constant 0 : i32
    %c0_i32_0 = arith.constant 0 : i32
    %c0_i32_1 = arith.constant 0 : i32
    return %c0_i32, %c0_i32_0 : i32, i32
  }
  func.func @transform_12(%arg0: i32) -> (i32, i32) {
    %c0_i32 = arith.constant 0 : i32
    %c0_i32_0 = arith.constant 0 : i32
    %c0_i32_1 = arith.constant 0 : i32
    return %c0_i32, %c0_i32_0 : i32, i32
  }
  func.func @transform_13(%arg0: i32) -> (i32, i32) {
    %c0_i32 = arith.constant 0 : i32
    %c0_i32_0 = arith.constant 0 : i32
    %c0_i32_1 = arith.constant 0 : i32
    return %c0_i32, %c0_i32_0 : i32, i32
  }
  func.func @transform_14(%arg0: i32) -> (i32, i32) {
    %c0_i32 = arith.constant 0 : i32
    %c0_i32_0 = arith.constant 0 : i32
    %c0_i32_1 = arith.constant 0 : i32
    return %c0_i32, %c0_i32_0 : i32, i32
  }
  func.func @transform_15(%arg0: i32) -> (i32, i32) {
    %c0_i32 = arith.constant 0 : i32
    %c0_i32_0 = arith.constant 0 : i32
    %c0_i32_1 = arith.constant 0 : i32
    return %c0_i32, %c0_i32_0 : i32, i32
  }
  func.func @transform_16(%arg0: i32) -> (i32, i32) {
    %c0_i32 = arith.constant 0 : i32
    %c0_i32_0 = arith.constant 0 : i32
    %c0_i32_1 = arith.constant 0 : i32
    return %c0_i32, %c0_i32_0 : i32, i32
  }
  func.func @transform_17(%arg0: i32) -> (i32, i32) {
    %c0_i32 = arith.constant 0 : i32
    %c0_i32_0 = arith.constant 0 : i32
    %c0_i32_1 = arith.constant 0 : i32
    return %c0_i32, %c0_i32_0 : i32, i32
  }
  func.func @transform_18(%arg0: i32) -> (i32, i32) {
    %c0_i32 = arith.constant 0 : i32
    %c0_i32_0 = arith.constant 0 : i32
    %c0_i32_1 = arith.constant 0 : i32
    return %c0_i32, %c0_i32_0 : i32, i32
  }
  func.func @transform_19(%arg0: i32) -> (i32, i32) {
    %c0_i32 = arith.constant 0 : i32
    %c0_i32_0 = arith.constant 0 : i32
    return %arg0, %c0_i32 : i32, i32
  }
  func.func @transform_20(%arg0: i32) -> (i32, i32, i32) {
    %c0_i32 = arith.constant 0 : i32
    %c0_i32_0 = arith.constant 0 : i32
    %c0_i32_1 = arith.constant 0 : i32
    return %c0_i32, %arg0, %c0_i32_0 : i32, i32, i32
  }
}

</mosaic_0001>

<llo_original>
// kernel: lspm_forward.1
$region0: #{lspm_forward.1}
  #allocation0 [shape = 'u32[]', space=smem, size = 0x4, offset = 0x4, fixed_abs, tag = 'smem constant byte address 0x4 - core index']
  #allocation1 [shape = 'u32[144,128]{1,0:T(1,128)}', space=vmem, size = 0x12000, scoped, tag = 'internal scratch']
  #allocation2 [shape = 'bf16[16,128]{1,0:T(8,128)(2,1)}', space=vmem, size = 0x1000, scoped, tag = 'scratch operand']
  #allocation3 [shape = 'bf16[16,32]{1,0:T(8,128)(2,1)}', space=vmem, size = 0x1000, scoped, tag = 'scratch operand']
  #allocation4 [shape = 'f32[1,1]{1,0:T(1,128)S(1)}', space=vmem, size = 0x200, scoped, tag = 'scoped memory for lspm_forward.1']
  %s0 = inlined_call_operand.vmem [shape: bf16[8,2,32], index: 0, kind: input, shape index: {}]
  %s1 = inlined_call_operand.vmem [shape: f32[2,32], index: 1, kind: input, shape index: {}]
  %s2 = inlined_call_operand.vmem [shape: f32[2,32], index: 2, kind: input, shape index: {}]
  %s3 = inlined_call_operand.vmem [shape: bf16[32,128], index: 3, kind: input, shape index: {}]
  %s4 = inlined_call_operand.vmem [shape: bf16[32,128], index: 4, kind: input, shape index: {}]
  %s5 = inlined_call_operand.vmem [shape: f32[1,128], index: 5, kind: input, shape index: {}]
  %s6 = inlined_call_operand.vmem [shape: bf16[32,256], index: 6, kind: input, shape index: {}]
  %s7 = inlined_call_operand.vmem [shape: f32[1,256], index: 7, kind: input, shape index: {}]
  %s8 = inlined_call_operand.vmem [shape: f32[1,256], index: 8, kind: input, shape index: {}]
  %s9 = inlined_call_operand.vmem [shape: f32[32,64], index: 9, kind: input, shape index: {}]
  %s10 = inlined_call_operand.vmem [shape: f32[32,64], index: 10, kind: input, shape index: {}]
  %s11 = inlined_call_operand.vmem [shape: f32[1,64], index: 11, kind: input, shape index: {}]
  %s12 = inlined_call_operand.vmem [shape: f32[64,32], index: 12, kind: input, shape index: {}]
  %s13 = inlined_call_operand.vmem [shape: f32[1,32], index: 13, kind: input, shape index: {}]
  %s14 = inlined_call_operand.vmem [shape: f32[32,32], index: 14, kind: input, shape index: {}]
  %s15 = inlined_call_operand.vmem [shape: f32[32,32], index: 15, kind: input, shape index: {}]
  %s16 = inlined_call_operand.vmem [shape: f32[1,32], index: 16, kind: input, shape index: {}]
  %s17 = inlined_call_operand.vmem [shape: f32[1,32], index: 17, kind: input, shape index: {}]
  %s18 = inlined_call_operand.<no memory space> [shape: f32[1,1], index: 18, kind: input, shape index: {}]
  %s19 = inlined_call_operand.vmem [shape: f32[2,1], index: 19, kind: output, shape index: {0}]
  %s20 = inlined_call_operand.vmem [shape: f32[8,2,1], index: 20, kind: output, shape index: {1}]
  %21 = xla_tuple %s19, %s20
  %s22 = sld [smem:[#allocation0]]
  $region94: #{lspm_forward.1} parent=0
    _
  %s24 = ssub.s32 1, %s22
  %s25 = scalar_select 0, %s24, %s22
  %v26 = vstv %s18
  %27 = vst [vmem:[#allocation4] sm:$0x1] %v26
  // Predicated region
  $region2: #{lspm_forward.1} parent=0 // pred_check
    _
  $region3: #{lspm_forward.1} parent=0 // pred_check_branch
    %29 = sbr.rel (0) target = $region5
  $region4: #{lspm_forward.1} parent=0 // pred_region
    _
  $region5: #{lspm_forward.1} parent=0 // pred_fallthru
    _
  // Predicated region
  $region6: #{lspm_forward.1} parent=0 // pred_check
    _
  $region7: #{lspm_forward.1} parent=0 // pred_check_branch
    %31 = sbr.rel (0) target = $region9
  $region8: #{lspm_forward.1} parent=0 // pred_region
    _
  $region9: #{lspm_forward.1} parent=0 // pred_fallthru
    _
  // Predicated region
  $region10: #{lspm_forward.1} parent=0 // pred_check
    _
  $region11: #{lspm_forward.1} parent=0 // pred_check_branch
    %33 = sbr.rel (0) target = $region13
  $region12: #{lspm_forward.1} parent=0 // pred_region
    _
  $region13: #{lspm_forward.1} parent=0 // pred_fallthru
    _
  // Predicated region
  $region14: #{lspm_forward.1} parent=0 // pred_check
    _
  $region15: #{lspm_forward.1} parent=0 // pred_check_branch
    %35 = sbr.rel (0) target = $region17
  $region16: #{lspm_forward.1} parent=0 // pred_region
    _
  $region17: #{lspm_forward.1} parent=0 // pred_fallthru
    _
  // Predicated region
  $region18: #{lspm_forward.1} parent=0 // pred_check
    _
  $region19: #{lspm_forward.1} parent=0 // pred_check_branch
    %37 = sbr.rel (0) target = $region21
  $region20: #{lspm_forward.1} parent=0 // pred_region
    _
  $region21: #{lspm_forward.1} parent=0 // pred_fallthru
    _
  // Predicated region
  $region22: #{lspm_forward.1} parent=0 // pred_check
    _
  $region23: #{lspm_forward.1} parent=0 // pred_check_branch
    %39 = sbr.rel (0) target = $region25
  $region24: #{lspm_forward.1} parent=0 // pred_region
    _
  $region25: #{lspm_forward.1} parent=0 // pred_fallthru
    _
  // Predicated region
  $region26: #{lspm_forward.1} parent=0 // pred_check
    _
  $region27: #{lspm_forward.1} parent=0 // pred_check_branch
    %41 = sbr.rel (0) target = $region29
  $region28: #{lspm_forward.1} parent=0 // pred_region
    _
  $region29: #{lspm_forward.1} parent=0 // pred_fallthru
    _
  // Predicated region
  $region30: #{lspm_forward.1} parent=0 // pred_check
    _
  $region31: #{lspm_forward.1} parent=0 // pred_check_branch
    %43 = sbr.rel (0) target = $region33
  $region32: #{lspm_forward.1} parent=0 // pred_region
    _
  $region33: #{lspm_forward.1} parent=0 // pred_fallthru
    _
  // Predicated region
  $region34: #{lspm_forward.1} parent=0 // pred_check
    _
  $region35: #{lspm_forward.1} parent=0 // pred_check_branch
    %45 = sbr.rel (0) target = $region37
  $region36: #{lspm_forward.1} parent=0 // pred_region
    _
  $region37: #{lspm_forward.1} parent=0 // pred_fallthru
    _
  // Predicated region
  $region38: #{lspm_forward.1} parent=0 // pred_check
    _
  $region39: #{lspm_forward.1} parent=0 // pred_check_branch
    %47 = sbr.rel (0) target = $region41
  $region40: #{lspm_forward.1} parent=0 // pred_region
    _
  $region41: #{lspm_forward.1} parent=0 // pred_fallthru
    _
  // Predicated region
  $region42: #{lspm_forward.1} parent=0 // pred_check
    _
  $region43: #{lspm_forward.1} parent=0 // pred_check_branch
    %49 = sbr.rel (0) target = $region45
  $region44: #{lspm_forward.1} parent=0 // pred_region
    _
  $region45: #{lspm_forward.1} parent=0 // pred_fallthru
    _
  // Predicated region
  $region46: #{lspm_forward.1} parent=0 // pred_check
    _
  $region47: #{lspm_forward.1} parent=0 // pred_check_branch
    %51 = sbr.rel (0) target = $region49
  $region48: #{lspm_forward.1} parent=0 // pred_region
    _
  $region49: #{lspm_forward.1} parent=0 // pred_fallthru
    _
  // Predicated region
  $region50: #{lspm_forward.1} parent=0 // pred_check
    _
  $region51: #{lspm_forward.1} parent=0 // pred_check_branch
    %53 = sbr.rel (0) target = $region53
  $region52: #{lspm_forward.1} parent=0 // pred_region
    _
  $region53: #{lspm_forward.1} parent=0 // pred_fallthru
    _
  // Predicated region
  $region54: #{lspm_forward.1} parent=0 // pred_check
    _
  $region55: #{lspm_forward.1} parent=0 // pred_check_branch
    %55 = sbr.rel (0) target = $region57
  $region56: #{lspm_forward.1} parent=0 // pred_region
    _
  $region57: #{lspm_forward.1} parent=0 // pred_fallthru
    _
  // Predicated region
  $region58: #{lspm_forward.1} parent=0 // pred_check
    _
  $region59: #{lspm_forward.1} parent=0 // pred_check_branch
    %57 = sbr.rel (0) target = $region61
  $region60: #{lspm_forward.1} parent=0 // pred_region
    _
  $region61: #{lspm_forward.1} parent=0 // pred_fallthru
    _
  // Predicated region
  $region62: #{lspm_forward.1} parent=0 // pred_check
    _
  $region63: #{lspm_forward.1} parent=0 // pred_check_branch
    %59 = sbr.rel (0) target = $region65
  $region64: #{lspm_forward.1} parent=0 // pred_region
    _
  $region65: #{lspm_forward.1} parent=0 // pred_fallthru
    _
  // Predicated region
  $region66: #{lspm_forward.1} parent=0 // pred_check
    _
  $region67: #{lspm_forward.1} parent=0 // pred_check_branch
    %61 = sbr.rel (0) target = $region69
  $region68: #{lspm_forward.1} parent=0 // pred_region
    _
  $region69: #{lspm_forward.1} parent=0 // pred_fallthru
    _
  // Predicated region
  $region70: #{lspm_forward.1} parent=0 // pred_check
    _
  $region71: #{lspm_forward.1} parent=0 // pred_check_branch
    %63 = sbr.rel (0) target = $region73
  $region72: #{lspm_forward.1} parent=0 // pred_region
    _
  $region73: #{lspm_forward.1} parent=0 // pred_fallthru
    _
  // Predicated region
  $region74: #{lspm_forward.1} parent=0 // pred_check
    _
  $region75: #{lspm_forward.1} parent=0 // pred_check_branch
    %65 = sbr.rel (0) target = $region77
  $region76: #{lspm_forward.1} parent=0 // pred_region
    _
  $region77: #{lspm_forward.1} parent=0 // pred_fallthru
    _
  %v67 = vld [vmem:[%s0] sm:$0x1]
  %v68 = vld [vmem:[%s0 + $0x1] sm:$0x1]
  %v69 = vld [vmem:[%s0 + $0x2] sm:$0x1]
  %v70 = vld [vmem:[%s0 + $0x3] sm:$0x1]
  %v71 = vld [vmem:[%s0 + $0x4] sm:$0x1]
  %v72 = vld [vmem:[%s0 + $0x5] sm:$0x1]
  %v73 = vld [vmem:[%s0 + $0x6] sm:$0x1]
  %v74 = vld [vmem:[%s0 + $0x7] sm:$0x1]
  %v75 = vld [vmem:[%s3] sm:$0xf]
  %v76 = vld [vmem:[%s3 + $0x4] sm:$0xf]
  %v77 = vld [vmem:[%s3 + $0x8] sm:$0xf]
  %v78 = vld [vmem:[%s3 + $0xc] sm:$0xf]
  %v79 = vld [vmem:[%s5] sm:$0x1]
  %v81 = vlaneseq
  %v82 = vshrl.u32 %v81, 7
  %v83 = vsub.s32 0, %v82
  %v84 = vrot.slane %v79, %v83
  %v94 = vcombine.low %v67, %v68
  %v95 = vcombine.low %v69, %v70
  %v96 = vcombine.low %v71, %v72
  %v97 = vcombine.low %v73, %v74
  %v99 = vunpack.c.l.s4 1966171168
  %v100 = vunpack.c.0.s8 %v99
  %v101 = vlaneseq
  %v102 = vshrl.u32 %v101, 7
  %v103 = vsub.s32 %v100, %v102
  %v104 = vrot.slane %v94, %v103
  %v106 = vunpack.c.l.s4 1966171168
  %v107 = vunpack.c.0.s8 %v106
  %v108 = vlaneseq
  %v109 = vshrl.u32 %v108, 7
  %v110 = vsub.s32 %v107, %v109
  %v111 = vrot.slane %v95, %v110
  %v113 = vunpack.c.l.s4 1966171168
  %v114 = vunpack.c.0.s8 %v113
  %v115 = vlaneseq
  %v116 = vshrl.u32 %v115, 7
  %v117 = vsub.s32 %v114, %v116
  %v118 = vrot.slane %v96, %v117
  %v120 = vunpack.c.l.s4 1966171168
  %v121 = vunpack.c.0.s8 %v120
  %v122 = vlaneseq
  %v123 = vshrl.u32 %v122, 7
  %v124 = vsub.s32 %v121, %v123
  %v125 = vrot.slane %v97, %v124
  %v126 = vcombine.low %v104, %v111
  %v127 = vcombine.low %v118, %v125
  %v129 = vunpack.c.l.s4 1966171168
  %v130 = vunpack.c.0.s8 %v129
  %v131 = vlaneseq
  %v132 = vshrl.u32 %v131, 7
  %v133 = vsub.s32 %v130, %v132
  %v134 = vrot.slane %v126, %v133
  %v136 = vunpack.c.l.s4 1966171168
  %v137 = vunpack.c.0.s8 %v136
  %v138 = vlaneseq
  %v139 = vshrl.u32 %v138, 7
  %v140 = vsub.s32 %v137, %v139
  %v141 = vrot.slane %v127, %v140
  %v142 = vcombine.low %v134, %v141
  %v147 = vunpack.c.l.b16 %v75
  %v148 = vunpack.c.l.b16 %v76
  %v149 = vunpack.c.l.b16 %v77
  %v150 = vunpack.c.l.b16 %v78
  %v151 = vpack.c.b16 %v148, %v147
  %v152 = vpack.c.b16 %v150, %v149
  %vm155 = vcmask 261120
  %v157 = vsel %vm155, %v142, 0
  %159 = vmatprep.subr.bf16.mxu0 0
  %160 = vmatpush1.bf16.msra.mxu0 0
  %161 = vmatprep.subr.bf16.mxu0 0
  %162 = vmatpush1.bf16.msra.mxu0 0
  %163 = vmatprep.subr.bf16.mxu0 0
  %164 = vmatpush1.bf16.msra.mxu0 0
  %165 = vmatprep.subr.bf16.mxu0 0
  %166 = vmatpush1.bf16.msra.mxu0 0
  %167 = vmatprep.subr.bf16.mxu0 0
  %168 = vmatpush1.bf16.msra.mxu0 0
  %169 = vmatprep.subr.bf16.mxu0 0
  %170 = vmatpush1.bf16.msra.mxu0 0
  %171 = vmatprep.subr.bf16.mxu0 0
  %172 = vmatpush1.bf16.msra.mxu0 %v152
  %173 = vmatprep.subr.bf16.mxu0 0
  %174 = vmatpush1.bf16.msra.mxu0 %v151
  %175 = vmatprep.subr.bf16.mxu0 0
  %176 = vmatpush2.bf16.msra.mxu0 0
  %177 = vmatprep.subr.bf16.mxu0 0
  %178 = vmatpush2.bf16.msra.mxu0 0
  %179 = vmatprep.subr.bf16.mxu0 0
  %180 = vmatpush2.bf16.msra.mxu0 0
  %181 = vmatprep.subr.bf16.mxu0 0
  %182 = vmatpush2.bf16.msra.mxu0 0
  %183 = vmatprep.subr.bf16.mxu0 0
  %184 = vmatpush2.bf16.msra.mxu0 0
  %185 = vmatprep.subr.bf16.mxu0 0
  %186 = vmatpush2.bf16.msra.mxu0 0
  %187 = vmatprep.subr.bf16.mxu0 0
  %188 = vmatpush2.bf16.msra.mxu0 0
  %189 = vmatprep.subr.bf16.mxu0 0
  %190 = vmatpush2.bf16.msra.mxu0 0
  %191 = vmatprep.mubr.bf16.mxu0 0
  %192 = vmatmul.mubr.bf16.gmra.mxu0 %v157
  %v193 = vpop.f32.mrf.mxu0
  %v194 = vadd.f32 %v84, %v193
  %v195 = vpop.f32.mrf.mxu0
  %v196 = vpop.f32.mrf.mxu0
  %v197 = vadd.f32 %v84, %v196
  %v198 = vpop.f32.mrf.mxu0
  %199 = vdwg.mxu0
  %v200 = vpack.c.bf16 %v197, %v194
  %v202 = vunpack.c.l.b16 %v200
  %v203 = vunpack.c.h.b16 %v200
  %v204 = vpack.c.b16 %v202, %v202
  %v205 = vpack.c.b16 %v203, %v203
  %208 = vst [vmem:[#allocation2] sm:$0xf] %v204
  %209 = vst [vmem:[#allocation2 + $0x4] sm:$0xf] %v205
  %v210 = vld [vmem:[#allocation2] sm:$0x1]
  %v211 = vunpack.c.l.bf16 %v210
  %v212 = vld [vmem:[%s4] sm:$0xf]
  %v213 = vld [vmem:[%s4 + $0x4] sm:$0xf]
  %v214 = vld [vmem:[%s4 + $0x8] sm:$0xf]
  %v215 = vld [vmem:[%s4 + $0xc] sm:$0xf]
  %v220 = vunpack.c.l.b16 %v212
  %v221 = vunpack.c.l.b16 %v213
  %v222 = vunpack.c.l.b16 %v214
  %v223 = vunpack.c.l.b16 %v215
  %v224 = vpack.c.b16 %v221, %v220
  %v225 = vpack.c.b16 %v223, %v222
  %v229 = vsel %vm155, 0, 0
  %231 = vmatprep.subr.bf16.mxu0 0
  %232 = vmatpush1.bf16.msra.mxu0 0
  %233 = vmatprep.subr.bf16.mxu0 0
  %234 = vmatpush1.bf16.msra.mxu0 0
  %235 = vmatprep.subr.bf16.mxu0 0
  %236 = vmatpush1.bf16.msra.mxu0 0
  %237 = vmatprep.subr.bf16.mxu0 0
  %238 = vmatpush1.bf16.msra.mxu0 0
  %239 = vmatprep.subr.bf16.mxu0 0
  %240 = vmatpush1.bf16.msra.mxu0 0
  %241 = vmatprep.subr.bf16.mxu0 0
  %242 = vmatpush1.bf16.msra.mxu0 0
  %243 = vmatprep.subr.bf16.mxu0 0
  %244 = vmatpush1.bf16.msra.mxu0 %v225
  %245 = vmatprep.subr.bf16.mxu0 0
  %246 = vmatpush1.bf16.msra.mxu0 %v224
  %247 = vmatprep.subr.bf16.mxu0 0
  %248 = vmatpush2.bf16.msra.mxu0 0
  %249 = vmatprep.subr.bf16.mxu0 0
  %250 = vmatpush2.bf16.msra.mxu0 0
  %251 = vmatprep.subr.bf16.mxu0 0
  %252 = vmatpush2.bf16.msra.mxu0 0
  %253 = vmatprep.subr.bf16.mxu0 0
  %254 = vmatpush2.bf16.msra.mxu0 0
  %255 = vmatprep.subr.bf16.mxu0 0
  %256 = vmatpush2.bf16.msra.mxu0 0
  %257 = vmatprep.subr.bf16.mxu0 0
  %258 = vmatpush2.bf16.msra.mxu0 0
  %259 = vmatprep.subr.bf16.mxu0 0
  %260 = vmatpush2.bf16.msra.mxu0 0
  %261 = vmatprep.subr.bf16.mxu0 0
  %262 = vmatpush2.bf16.msra.mxu0 0
  %263 = vmatprep.mubr.bf16.mxu0 0
  %264 = vmatmul.mubr.bf16.gmra.mxu0 %v229
  %v265 = vpop.f32.mrf.mxu0
  %v266 = vadd.f32 0.0, %v265
  %v267 = vpop.f32.mrf.mxu0
  %v268 = vpop.f32.mrf.mxu0
  %v269 = vpop.f32.mrf.mxu0
  %270 = vdwg.mxu0
  %v271 = vadd.f32 %v211, %v266
  %v272 = vxor.u32 %v271, 2147483648
  %v273 = vmul.f32 %v272, 1.442695
  %v274 = vpow.pop %v273
  %v275 = vadd.f32 %v274, 1.0
  %v276 = vrcp.pop %v275
  %v277 = vmul.f32 1.0, %v276
  %v278 = vmul.f32 %v277, 2.0
  %v279 = vsub.f32 %v278, 1.0
  %v280 = vmul.f32 %v277, 0.0
  %282 = vrot.lane.b32.xlu0 %v279, 64
  %v283 = vpop.permute.xlu0 %282
  %v285 = vmul.f32 %v277, %v283
  %287 = vrot.lane.b32.xlu0 %v285, 32
  %v288 = vpop.permute.xlu0 %287
  %v290 = vadd.f32 %v280, %v288
  %v291 = vmul.f32 %v290, 2.0
  %v292 = vxor.u32 %v291, 2147483648
  %v293 = vmul.f32 %v292, 1.442695
  %v294 = vpow.pop %v293
  %v295 = vadd.f32 %v294, 1.0
  %v296 = vrcp.pop %v295
  %v297 = vmul.f32 1.0, %v296
  %v298 = vmul.f32 %v297, 2.0
  %v299 = vsub.f32 %v298, 1.0
  %301 = vrot.lane.b32.xlu0 %v299, 64
  %v302 = vpop.permute.xlu0 %301
  %v304 = vmul.f32 %v277, %v302
  %v305 = vpack.c.bf16 %v304, %v304
  %v307 = vunpack.c.l.b16 %v305
  %v308 = vpack.c.b16 %v307, %v307
  %309 = vrot.lane.b32.xlu0 %v308, 32
  %v310 = vpop.permute.xlu0 %309
  %vm312 = vcmask 253952
  %313 = vst.msk [vmem:[#allocation3] sm:$0x1] %vm312, %v310
  %v314 = vld [vmem:[#allocation2] sm:$0x2]
  %v315 = vunpack.c.l.bf16 %v314
  %v316 = vld [vmem:[%s4] sm:$0xf]
  %v317 = vld [vmem:[%s4 + $0x4] sm:$0xf]
  %v318 = vld [vmem:[%s4 + $0x8] sm:$0xf]
  %v319 = vld [vmem:[%s4 + $0xc] sm:$0xf]
  %320 = vrot.lane.b32.xlu0 %v305, 32
  %v321 = vpop.permute.xlu0 %320
  %v326 = vunpack.c.l.b16 %v316
  %v327 = vunpack.c.l.b16 %v317
  %v328 = vunpack.c.l.b16 %v318
  %v329 = vunpack.c.l.b16 %v319
  %v330 = vpack.c.b16 %v327, %v326
  %v331 = vpack.c.b16 %v329, %v328
  %v335 = vsel %vm155, %v321, 0
  %337 = vmatprep.subr.bf16.mxu0 0
  %338 = vmatpush1.bf16.msra.mxu0 0
  %339 = vmatprep.subr.bf16.mxu0 0
  %340 = vmatpush1.bf16.msra.mxu0 0
  %341 = vmatprep.subr.bf16.mxu0 0
  %342 = vmatpush1.bf16.msra.mxu0 0
  %343 = vmatprep.subr.bf16.mxu0 0
  %344 = vmatpush1.bf16.msra.mxu0 0
  %345 = vmatprep.subr.bf16.mxu0 0
  %346 = vmatpush1.bf16.msra.mxu0 0
  %347 = vmatprep.subr.bf16.mxu0 0
  %348 = vmatpush1.bf16.msra.mxu0 0
  %349 = vmatprep.subr.bf16.mxu0 0
  %350 = vmatpush1.bf16.msra.mxu0 %v331
  %351 = vmatprep.subr.bf16.mxu0 0
  %352 = vmatpush1.bf16.msra.mxu0 %v330
  %353 = vmatprep.subr.bf16.mxu0 0
  %354 = vmatpush2.bf16.msra.mxu0 0
  %355 = vmatprep.subr.bf16.mxu0 0
  %356 = vmatpush2.bf16.msra.mxu0 0
  %357 = vmatprep.subr.bf16.mxu0 0
  %358 = vmatpush2.bf16.msra.mxu0 0
  %359 = vmatprep.subr.bf16.mxu0 0
  %360 = vmatpush2.bf16.msra.mxu0 0
  %361 = vmatprep.subr.bf16.mxu0 0
  %362 = vmatpush2.bf16.msra.mxu0 0
  %363 = vmatprep.subr.bf16.mxu0 0
  %364 = vmatpush2.bf16.msra.mxu0 0
  %365 = vmatprep.subr.bf16.mxu0 0
  %366 = vmatpush2.bf16.msra.mxu0 0
  %367 = vmatprep.subr.bf16.mxu0 0
  %368 = vmatpush2.bf16.msra.mxu0 0
  %369 = vmatprep.mubr.bf16.mxu0 0
  %370 = vmatmul.mubr.bf16.gmra.mxu0 %v335
  %v371 = vpop.f32.mrf.mxu0
  %v372 = vadd.f32 0.0, %v371
  %v373 = vpop.f32.mrf.mxu0
  %v374 = vpop.f32.mrf.mxu0
  %v375 = vpop.f32.mrf.mxu0
  %376 = vdwg.mxu0
  %v378 = vrot.slane %v372, 6
  %v380 = vadd.f32 %v315, %v378
  %v381 = vxor.u32 %v380, 2147483648
  %v382 = vmul.f32 %v381, 1.442695
  %v383 = vpow.pop %v382
  %v384 = vadd.f32 %v383, 1.0
  %v385 = vrcp.pop %v384
  %v386 = vmul.f32 1.0, %v385
  %v387 = vmul.f32 %v386, 2.0
  %v388 = vsub.f32 %v387, 1.0
  %v390 = vrot.slane %v290, 6
  %v392 = vmul.f32 %v386, %v390
  %394 = vrot.lane.b32.xlu0 %v388, 64
  %v395 = vpop.permute.xlu0 %394
  %v397 = vmul.f32 %v386, %v395
  %399 = vrot.lane.b32.xlu0 %v397, 32
  %v400 = vpop.permute.xlu0 %399
  %v402 = vadd.f32 %v392, %v400
  %v403 = vmul.f32 %v402, 2.0
  %v404 = vxor.u32 %v403, 2147483648
  %v405 = vmul.f32 %v404, 1.442695
  %v406 = vpow.pop %v405
  %v407 = vadd.f32 %v406, 1.0
  %v408 = vrcp.pop %v407
  %v409 = vmul.f32 1.0, %v408
  %v410 = vmul.f32 %v409, 2.0
  %v411 = vsub.f32 %v410, 1.0
  %413 = vrot.lane.b32.xlu0 %v411, 64
  %v414 = vpop.permute.xlu0 %413
  %v416 = vmul.f32 %v386, %v414
  %v417 = vpack.c.bf16 %v416, %v416
  %v419 = vunpack.c.l.b16 %v417
  %v420 = vpack.c.b16 %v419, %v419
  %421 = vrot.lane.b32.xlu0 %v420, 32
  %v422 = vpop.permute.xlu0 %421
  %vm424 = vcmask 254977
  %425 = vst.msk [vmem:[#allocation3] sm:$0x2] %vm424, %v422
  %v426 = vld [vmem:[#allocation2] sm:$0x4]
  %v427 = vunpack.c.l.bf16 %v426
  %v428 = vld [vmem:[%s4] sm:$0xf]
  %v429 = vld [vmem:[%s4 + $0x4] sm:$0xf]
  %v430 = vld [vmem:[%s4 + $0x8] sm:$0xf]
  %v431 = vld [vmem:[%s4 + $0xc] sm:$0xf]
  %v432 = vrot.slane %v417, 1
  %433 = vrot.lane.b32.xlu0 %v432, 32
  %v434 = vpop.permute.xlu0 %433
  %v439 = vunpack.c.l.b16 %v428
  %v440 = vunpack.c.l.b16 %v429
  %v441 = vunpack.c.l.b16 %v430
  %v442 = vunpack.c.l.b16 %v431
  %v443 = vpack.c.b16 %v440, %v439
  %v444 = vpack.c.b16 %v442, %v441
  %v448 = vsel %vm155, %v434, 0
  %450 = vmatprep.subr.bf16.mxu0 0
  %451 = vmatpush1.bf16.msra.mxu0 0
  %452 = vmatprep.subr.bf16.mxu0 0
  %453 = vmatpush1.bf16.msra.mxu0 0
  %454 = vmatprep.subr.bf16.mxu0 0
  %455 = vmatpush1.bf16.msra.mxu0 0
  %456 = vmatprep.subr.bf16.mxu0 0
  %457 = vmatpush1.bf16.msra.mxu0 0
  %458 = vmatprep.subr.bf16.mxu0 0
  %459 = vmatpush1.bf16.msra.mxu0 0
  %460 = vmatprep.subr.bf16.mxu0 0
  %461 = vmatpush1.bf16.msra.mxu0 0
  %462 = vmatprep.subr.bf16.mxu0 0
  %463 = vmatpush1.bf16.msra.mxu0 %v444
  %464 = vmatprep.subr.bf16.mxu0 0
  %465 = vmatpush1.bf16.msra.mxu0 %v443
  %466 = vmatprep.subr.bf16.mxu0 0
  %467 = vmatpush2.bf16.msra.mxu0 0
  %468 = vmatprep.subr.bf16.mxu0 0
  %469 = vmatpush2.bf16.msra.mxu0 0
  %470 = vmatprep.subr.bf16.mxu0 0
  %471 = vmatpush2.bf16.msra.mxu0 0
  %472 = vmatprep.subr.bf16.mxu0 0
  %473 = vmatpush2.bf16.msra.mxu0 0
  %474 = vmatprep.subr.bf16.mxu0 0
  %475 = vmatpush2.bf16.msra.mxu0 0
  %476 = vmatprep.subr.bf16.mxu0 0
  %477 = vmatpush2.bf16.msra.mxu0 0
  %478 = vmatprep.subr.bf16.mxu0 0
  %479 = vmatpush2.bf16.msra.mxu0 0
  %480 = vmatprep.subr.bf16.mxu0 0
  %481 = vmatpush2.bf16.msra.mxu0 0
  %482 = vmatprep.mubr.bf16.mxu0 0
  %483 = vmatmul.mubr.bf16.gmra.mxu0 %v448
  %v484 = vpop.f32.mrf.mxu0
  %v485 = vadd.f32 0.0, %v484
  %v486 = vpop.f32.mrf.mxu0
  %v487 = vpop.f32.mrf.mxu0
  %v488 = vpop.f32.mrf.mxu0
  %489 = vdwg.mxu0
  %v491 = vrot.slane %v485, 4
  %v493 = vadd.f32 %v427, %v491
  %v494 = vxor.u32 %v493, 2147483648
  %v495 = vmul.f32 %v494, 1.442695
  %v496 = vpow.pop %v495
  %v497 = vadd.f32 %v496, 1.0
  %v498 = vrcp.pop %v497
  %v499 = vmul.f32 1.0, %v498
  %v500 = vmul.f32 %v499, 2.0
  %v501 = vsub.f32 %v500, 1.0
  %v503 = vrot.slane %v402, 6
  %v505 = vmul.f32 %v499, %v503
  %507 = vrot.lane.b32.xlu0 %v501, 64
  %v508 = vpop.permute.xlu0 %507
  %v510 = vmul.f32 %v499, %v508
  %512 = vrot.lane.b32.xlu0 %v510, 32
  %v513 = vpop.permute.xlu0 %512
  %v515 = vadd.f32 %v505, %v513
  %v516 = vmul.f32 %v515, 2.0
  %v517 = vxor.u32 %v516, 2147483648
  %v518 = vmul.f32 %v517, 1.442695
  %v519 = vpow.pop %v518
  %v520 = vadd.f32 %v519, 1.0
  %v521 = vrcp.pop %v520
  %v522 = vmul.f32 1.0, %v521
  %v523 = vmul.f32 %v522, 2.0
  %v524 = vsub.f32 %v523, 1.0
  %526 = vrot.lane.b32.xlu0 %v524, 64
  %v527 = vpop.permute.xlu0 %526
  %v529 = vmul.f32 %v499, %v527
  %v530 = vpack.c.bf16 %v529, %v529
  %v532 = vunpack.c.l.b16 %v530
  %v533 = vpack.c.b16 %v532, %v532
  %534 = vrot.lane.b32.xlu0 %v533, 32
  %v535 = vpop.permute.xlu0 %534
  %vm537 = vcmask 256002
  %538 = vst.msk [vmem:[#allocation3] sm:$0x4] %vm537, %v535
  %v539 = vld [vmem:[#allocation2] sm:$0x8]
  %v540 = vunpack.c.l.bf16 %v539
  %v541 = vld [vmem:[%s4] sm:$0xf]
  %v542 = vld [vmem:[%s4 + $0x4] sm:$0xf]
  %v543 = vld [vmem:[%s4 + $0x8] sm:$0xf]
  %v544 = vld [vmem:[%s4 + $0xc] sm:$0xf]
  %v545 = vrot.slane %v530, 2
  %546 = vrot.lane.b32.xlu0 %v545, 32
  %v547 = vpop.permute.xlu0 %546
  %v552 = vunpack.c.l.b16 %v541
  %v553 = vunpack.c.l.b16 %v542
  %v554 = vunpack.c.l.b16 %v543
  %v555 = vunpack.c.l.b16 %v544
  %v556 = vpack.c.b16 %v553, %v552
  %v557 = vpack.c.b16 %v555, %v554
  %v561 = vsel %vm155, %v547, 0
  %563 = vmatprep.subr.bf16.mxu0 0
  %564 = vmatpush1.bf16.msra.mxu0 0
  %565 = vmatprep.subr.bf16.mxu0 0
  %566 = vmatpush1.bf16.msra.mxu0 0
  %567 = vmatprep.subr.bf16.mxu0 0
  %568 = vmatpush1.bf16.msra.mxu0 0
  %569 = vmatprep.subr.bf16.mxu0 0
  %570 = vmatpush1.bf16.msra.mxu0 0
  %571 = vmatprep.subr.bf16.mxu0 0
  %572 = vmatpush1.bf16.msra.mxu0 0
  %573 = vmatprep.subr.bf16.mxu0 0
  %574 = vmatpush1.bf16.msra.mxu0 0
  %575 = vmatprep.subr.bf16.mxu0 0
  %576 = vmatpush1.bf16.msra.mxu0 %v557
  %577 = vmatprep.subr.bf16.mxu0 0
  %578 = vmatpush1.bf16.msra.mxu0 %v556
  %579 = vmatprep.subr.bf16.mxu0 0
  %580 = vmatpush2.bf16.msra.mxu0 0
  %581 = vmatprep.subr.bf16.mxu0 0
  %582 = vmatpush2.bf16.msra.mxu0 0
  %583 = vmatprep.subr.bf16.mxu0 0
  %584 = vmatpush2.bf16.msra.mxu0 0
  %585 = vmatprep.subr.bf16.mxu0 0
  %586 = vmatpush2.bf16.msra.mxu0 0
  %587 = vmatprep.subr.bf16.mxu0 0
  %588 = vmatpush2.bf16.msra.mxu0 0
  %589 = vmatprep.subr.bf16.mxu0 0
  %590 = vmatpush2.bf16.msra.mxu0 0
  %591 = vmatprep.subr.bf16.mxu0 0
  %592 = vmatpush2.bf16.msra.mxu0 0
  %593 = vmatprep.subr.bf16.mxu0 0
  %594 = vmatpush2.bf16.msra.mxu0 0
  %595 = vmatprep.mubr.bf16.mxu0 0
  %596 = vmatmul.mubr.bf16.gmra.mxu0 %v561
  %v597 = vpop.f32.mrf.mxu0
  %v598 = vadd.f32 0.0, %v597
  %v599 = vpop.f32.mrf.mxu0
  %v600 = vpop.f32.mrf.mxu0
  %v601 = vpop.f32.mrf.mxu0
  %602 = vdwg.mxu0
  %v604 = vrot.slane %v598, 2
  %v606 = vadd.f32 %v540, %v604
  %v607 = vxor.u32 %v606, 2147483648
  %v608 = vmul.f32 %v607, 1.442695
  %v609 = vpow.pop %v608
  %v610 = vadd.f32 %v609, 1.0
  %v611 = vrcp.pop %v610
  %v612 = vmul.f32 1.0, %v611
  %v613 = vmul.f32 %v612, 2.0
  %v614 = vsub.f32 %v613, 1.0
  %v616 = vrot.slane %v515, 6
  %v618 = vmul.f32 %v612, %v616
  %620 = vrot.lane.b32.xlu0 %v614, 64
  %v621 = vpop.permute.xlu0 %620
  %v623 = vmul.f32 %v612, %v621
  %625 = vrot.lane.b32.xlu0 %v623, 32
  %v626 = vpop.permute.xlu0 %625
  %v628 = vadd.f32 %v618, %v626
  %v629 = vmul.f32 %v628, 2.0
  %v630 = vxor.u32 %v629, 2147483648
  %v631 = vmul.f32 %v630, 1.442695
  %v632 = vpow.pop %v631
  %v633 = vadd.f32 %v632, 1.0
  %v634 = vrcp.pop %v633
  %v635 = vmul.f32 1.0, %v634
  %v636 = vmul.f32 %v635, 2.0
  %v637 = vsub.f32 %v636, 1.0
  %639 = vrot.lane.b32.xlu0 %v637, 64
  %v640 = vpop.permute.xlu0 %639
  %v642 = vmul.f32 %v612, %v640
  %v643 = vpack.c.bf16 %v642, %v642
  %v645 = vunpack.c.l.b16 %v643
  %v646 = vpack.c.b16 %v645, %v645
  %647 = vrot.lane.b32.xlu0 %v646, 32
  %v648 = vpop.permute.xlu0 %647
  %vm650 = vcmask 257027
  %651 = vst.msk [vmem:[#allocation3] sm:$0x8] %vm650, %v648
  %v652 = vld [vmem:[#allocation2 + $0x4] sm:$0x1]
  %v653 = vunpack.c.l.bf16 %v652
  %v654 = vld [vmem:[%s4] sm:$0xf]
  %v655 = vld [vmem:[%s4 + $0x4] sm:$0xf]
  %v656 = vld [vmem:[%s4 + $0x8] sm:$0xf]
  %v657 = vld [vmem:[%s4 + $0xc] sm:$0xf]
  %v658 = vrot.slane %v643, 3
  %659 = vrot.lane.b32.xlu0 %v658, 32
  %v660 = vpop.permute.xlu0 %659
  %v665 = vunpack.c.l.b16 %v654
  %v666 = vunpack.c.l.b16 %v655
  %v667 = vunpack.c.l.b16 %v656
  %v668 = vunpack.c.l.b16 %v657
  %v669 = vpack.c.b16 %v666, %v665
  %v670 = vpack.c.b16 %v668, %v667
  %v674 = vsel %vm155, %v660, 0
  %676 = vmatprep.subr.bf16.mxu0 0
  %677 = vmatpush1.bf16.msra.mxu0 0
  %678 = vmatprep.subr.bf16.mxu0 0
  %679 = vmatpush1.bf16.msra.mxu0 0
  %680 = vmatprep.subr.bf16.mxu0 0
  %681 = vmatpush1.bf16.msra.mxu0 0
  %682 = vmatprep.subr.bf16.mxu0 0
  %683 = vmatpush1.bf16.msra.mxu0 0
  %684 = vmatprep.subr.bf16.mxu0 0
  %685 = vmatpush1.bf16.msra.mxu0 0
  %686 = vmatprep.subr.bf16.mxu0 0
  %687 = vmatpush1.bf16.msra.mxu0 0
  %688 = vmatprep.subr.bf16.mxu0 0
  %689 = vmatpush1.bf16.msra.mxu0 %v670
  %690 = vmatprep.subr.bf16.mxu0 0
  %691 = vmatpush1.bf16.msra.mxu0 %v669
  %692 = vmatprep.subr.bf16.mxu0 0
  %693 = vmatpush2.bf16.msra.mxu0 0
  %694 = vmatprep.subr.bf16.mxu0 0
  %695 = vmatpush2.bf16.msra.mxu0 0
  %696 = vmatprep.subr.bf16.mxu0 0
  %697 = vmatpush2.bf16.msra.mxu0 0
  %698 = vmatprep.subr.bf16.mxu0 0
  %699 = vmatpush2.bf16.msra.mxu0 0
  %700 = vmatprep.subr.bf16.mxu0 0
  %701 = vmatpush2.bf16.msra.mxu0 0
  %702 = vmatprep.subr.bf16.mxu0 0
  %703 = vmatpush2.bf16.msra.mxu0 0
  %704 = vmatprep.subr.bf16.mxu0 0
  %705 = vmatpush2.bf16.msra.mxu0 0
  %706 = vmatprep.subr.bf16.mxu0 0
  %707 = vmatpush2.bf16.msra.mxu0 0
  %708 = vmatprep.mubr.bf16.mxu0 0
  %709 = vmatmul.mubr.bf16.gmra.mxu0 %v674
  %v710 = vpop.f32.mrf.mxu0
  %v711 = vadd.f32 0.0, %v710
  %v712 = vpop.f32.mrf.mxu0
  %v713 = vpop.f32.mrf.mxu0
  %v714 = vpop.f32.mrf.mxu0
  %715 = vdwg.mxu0
  %v716 = vadd.f32 %v653, %v711
  %v717 = vxor.u32 %v716, 2147483648
  %v718 = vmul.f32 %v717, 1.442695
  %v719 = vpow.pop %v718
  %v720 = vadd.f32 %v719, 1.0
  %v721 = vrcp.pop %v720
  %v722 = vmul.f32 1.0, %v721
  %v723 = vmul.f32 %v722, 2.0
  %v724 = vsub.f32 %v723, 1.0
  %v726 = vrot.slane %v628, 6
  %v728 = vmul.f32 %v722, %v726
  %730 = vrot.lane.b32.xlu0 %v724, 64
  %v731 = vpop.permute.xlu0 %730
  %v733 = vmul.f32 %v722, %v731
  %735 = vrot.lane.b32.xlu0 %v733, 32
  %v736 = vpop.permute.xlu0 %735
  %v738 = vadd.f32 %v728, %v736
  %v739 = vmul.f32 %v738, 2.0
  %v740 = vxor.u32 %v739, 2147483648
  %v741 = vmul.f32 %v740, 1.442695
  %v742 = vpow.pop %v741
  %v743 = vadd.f32 %v742, 1.0
  %v744 = vrcp.pop %v743
  %v745 = vmul.f32 1.0, %v744
  %v746 = vmul.f32 %v745, 2.0
  %v747 = vsub.f32 %v746, 1.0
  %749 = vrot.lane.b32.xlu0 %v747, 64
  %v750 = vpop.permute.xlu0 %749
  %v752 = vmul.f32 %v722, %v750
  %v753 = vpack.c.bf16 %v752, %v752
  %v755 = vunpack.c.l.b16 %v753
  %v756 = vpack.c.b16 %v755, %v755
  %757 = vrot.lane.b32.xlu0 %v756, 32
  %v758 = vpop.permute.xlu0 %757
  %760 = vst.msk [vmem:[#allocation3 + $0x4] sm:$0x1] %vm312, %v758
  %v761 = vld [vmem:[#allocation2 + $0x4] sm:$0x2]
  %v762 = vunpack.c.l.bf16 %v761
  %v763 = vld [vmem:[%s4] sm:$0xf]
  %v764 = vld [vmem:[%s4 + $0x4] sm:$0xf]
  %v765 = vld [vmem:[%s4 + $0x8] sm:$0xf]
  %v766 = vld [vmem:[%s4 + $0xc] sm:$0xf]
  %767 = vrot.lane.b32.xlu0 %v753, 32
  %v768 = vpop.permute.xlu0 %767
  %v773 = vunpack.c.l.b16 %v763
  %v774 = vunpack.c.l.b16 %v764
  %v775 = vunpack.c.l.b16 %v765
  %v776 = vunpack.c.l.b16 %v766
  %v777 = vpack.c.b16 %v774, %v773
  %v778 = vpack.c.b16 %v776, %v775
  %v782 = vsel %vm155, %v768, 0
  %784 = vmatprep.subr.bf16.mxu0 0
  %785 = vmatpush1.bf16.msra.mxu0 0
  %786 = vmatprep.subr.bf16.mxu0 0
  %787 = vmatpush1.bf16.msra.mxu0 0
  %788 = vmatprep.subr.bf16.mxu0 0
  %789 = vmatpush1.bf16.msra.mxu0 0
  %790 = vmatprep.subr.bf16.mxu0 0
  %791 = vmatpush1.bf16.msra.mxu0 0
  %792 = vmatprep.subr.bf16.mxu0 0
  %793 = vmatpush1.bf16.msra.mxu0 0
  %794 = vmatprep.subr.bf16.mxu0 0
  %795 = vmatpush1.bf16.msra.mxu0 0
  %796 = vmatprep.subr.bf16.mxu0 0
  %797 = vmatpush1.bf16.msra.mxu0 %v778
  %798 = vmatprep.subr.bf16.mxu0 0
  %799 = vmatpush1.bf16.msra.mxu0 %v777
  %800 = vmatprep.subr.bf16.mxu0 0
  %801 = vmatpush2.bf16.msra.mxu0 0
  %802 = vmatprep.subr.bf16.mxu0 0
  %803 = vmatpush2.bf16.msra.mxu0 0
  %804 = vmatprep.subr.bf16.mxu0 0
  %805 = vmatpush2.bf16.msra.mxu0 0
  %806 = vmatprep.subr.bf16.mxu0 0
  %807 = vmatpush2.bf16.msra.mxu0 0
  %808 = vmatprep.subr.bf16.mxu0 0
  %809 = vmatpush2.bf16.msra.mxu0 0
  %810 = vmatprep.subr.bf16.mxu0 0
  %811 = vmatpush2.bf16.msra.mxu0 0
  %812 = vmatprep.subr.bf16.mxu0 0
  %813 = vmatpush2.bf16.msra.mxu0 0
  %814 = vmatprep.subr.bf16.mxu0 0
  %815 = vmatpush2.bf16.msra.mxu0 0
  %816 = vmatprep.mubr.bf16.mxu0 0
  %817 = vmatmul.mubr.bf16.gmra.mxu0 %v782
  %v818 = vpop.f32.mrf.mxu0
  %v819 = vadd.f32 0.0, %v818
  %v820 = vpop.f32.mrf.mxu0
  %v821 = vpop.f32.mrf.mxu0
  %v822 = vpop.f32.mrf.mxu0
  %823 = vdwg.mxu0
  %v825 = vrot.slane %v819, 6
  %v827 = vadd.f32 %v762, %v825
  %v828 = vxor.u32 %v827, 2147483648
  %v829 = vmul.f32 %v828, 1.442695
  %v830 = vpow.pop %v829
  %v831 = vadd.f32 %v830, 1.0
  %v832 = vrcp.pop %v831
  %v833 = vmul.f32 1.0, %v832
  %v834 = vmul.f32 %v833, 2.0
  %v835 = vsub.f32 %v834, 1.0
  %v837 = vrot.slane %v738, 6
  %v839 = vmul.f32 %v833, %v837
  %841 = vrot.lane.b32.xlu0 %v835, 64
  %v842 = vpop.permute.xlu0 %841
  %v844 = vmul.f32 %v833, %v842
  %846 = vrot.lane.b32.xlu0 %v844, 32
  %v847 = vpop.permute.xlu0 %846
  %v849 = vadd.f32 %v839, %v847
  %v850 = vmul.f32 %v849, 2.0
  %v851 = vxor.u32 %v850, 2147483648
  %v852 = vmul.f32 %v851, 1.442695
  %v853 = vpow.pop %v852
  %v854 = vadd.f32 %v853, 1.0
  %v855 = vrcp.pop %v854
  %v856 = vmul.f32 1.0, %v855
  %v857 = vmul.f32 %v856, 2.0
  %v858 = vsub.f32 %v857, 1.0
  %860 = vrot.lane.b32.xlu0 %v858, 64
  %v861 = vpop.permute.xlu0 %860
  %v863 = vmul.f32 %v833, %v861
  %v864 = vpack.c.bf16 %v863, %v863
  %v866 = vunpack.c.l.b16 %v864
  %v867 = vpack.c.b16 %v866, %v866
  %868 = vrot.lane.b32.xlu0 %v867, 32
  %v869 = vpop.permute.xlu0 %868
  %871 = vst.msk [vmem:[#allocation3 + $0x4] sm:$0x2] %vm424, %v869
  %v872 = vld [vmem:[#allocation2 + $0x4] sm:$0x4]
  %v873 = vunpack.c.l.bf16 %v872
  %v874 = vld [vmem:[%s4] sm:$0xf]
  %v875 = vld [vmem:[%s4 + $0x4] sm:$0xf]
  %v876 = vld [vmem:[%s4 + $0x8] sm:$0xf]
  %v877 = vld [vmem:[%s4 + $0xc] sm:$0xf]
  %v878 = vrot.slane %v864, 1
  %879 = vrot.lane.b32.xlu0 %v878, 32
  %v880 = vpop.permute.xlu0 %879
  %v885 = vunpack.c.l.b16 %v874
  %v886 = vunpack.c.l.b16 %v875
  %v887 = vunpack.c.l.b16 %v876
  %v888 = vunpack.c.l.b16 %v877
  %v889 = vpack.c.b16 %v886, %v885
  %v890 = vpack.c.b16 %v888, %v887
  %v894 = vsel %vm155, %v880, 0
  %896 = vmatprep.subr.bf16.mxu0 0
  %897 = vmatpush1.bf16.msra.mxu0 0
  %898 = vmatprep.subr.bf16.mxu0 0
  %899 = vmatpush1.bf16.msra.mxu0 0
  %900 = vmatprep.subr.bf16.mxu0 0
  %901 = vmatpush1.bf16.msra.mxu0 0
  %902 = vmatprep.subr.bf16.mxu0 0
  %903 = vmatpush1.bf16.msra.mxu0 0
  %904 = vmatprep.subr.bf16.mxu0 0
  %905 = vmatpush1.bf16.msra.mxu0 0
  %906 = vmatprep.subr.bf16.mxu0 0
  %907 = vmatpush1.bf16.msra.mxu0 0
  %908 = vmatprep.subr.bf16.mxu0 0
  %909 = vmatpush1.bf16.msra.mxu0 %v890
  %910 = vmatprep.subr.bf16.mxu0 0
  %911 = vmatpush1.bf16.msra.mxu0 %v889
  %912 = vmatprep.subr.bf16.mxu0 0
  %913 = vmatpush2.bf16.msra.mxu0 0
  %914 = vmatprep.subr.bf16.mxu0 0
  %915 = vmatpush2.bf16.msra.mxu0 0
  %916 = vmatprep.subr.bf16.mxu0 0
  %917 = vmatpush2.bf16.msra.mxu0 0
  %918 = vmatprep.subr.bf16.mxu0 0
  %919 = vmatpush2.bf16.msra.mxu0 0
  %920 = vmatprep.subr.bf16.mxu0 0
  %921 = vmatpush2.bf16.msra.mxu0 0
  %922 = vmatprep.subr.bf16.mxu0 0
  %923 = vmatpush2.bf16.msra.mxu0 0
  %924 = vmatprep.subr.bf16.mxu0 0
  %925 = vmatpush2.bf16.msra.mxu0 0
  %926 = vmatprep.subr.bf16.mxu0 0
  %927 = vmatpush2.bf16.msra.mxu0 0
  %928 = vmatprep.mubr.bf16.mxu0 0
  %929 = vmatmul.mubr.bf16.gmra.mxu0 %v894
  %v930 = vpop.f32.mrf.mxu0
  %v931 = vadd.f32 0.0, %v930
  %v932 = vpop.f32.mrf.mxu0
  %v933 = vpop.f32.mrf.mxu0
  %v934 = vpop.f32.mrf.mxu0
  %935 = vdwg.mxu0
  %v937 = vrot.slane %v931, 4
  %v939 = vadd.f32 %v873, %v937
  %v940 = vxor.u32 %v939, 2147483648
  %v941 = vmul.f32 %v940, 1.442695
  %v942 = vpow.pop %v941
  %v943 = vadd.f32 %v942, 1.0
  %v944 = vrcp.pop %v943
  %v945 = vmul.f32 1.0, %v944
  %v946 = vmul.f32 %v945, 2.0
  %v947 = vsub.f32 %v946, 1.0
  %v949 = vrot.slane %v849, 6
  %v951 = vmul.f32 %v945, %v949
  %953 = vrot.lane.b32.xlu0 %v947, 64
  %v954 = vpop.permute.xlu0 %953
  %v956 = vmul.f32 %v945, %v954
  %958 = vrot.lane.b32.xlu0 %v956, 32
  %v959 = vpop.permute.xlu0 %958
  %v961 = vadd.f32 %v951, %v959
  %v962 = vmul.f32 %v961, 2.0
  %v963 = vxor.u32 %v962, 2147483648
  %v964 = vmul.f32 %v963, 1.442695
  %v965 = vpow.pop %v964
  %v966 = vadd.f32 %v965, 1.0
  %v967 = vrcp.pop %v966
  %v968 = vmul.f32 1.0, %v967
  %v969 = vmul.f32 %v968, 2.0
  %v970 = vsub.f32 %v969, 1.0
  %972 = vrot.lane.b32.xlu0 %v970, 64
  %v973 = vpop.permute.xlu0 %972
  %v975 = vmul.f32 %v945, %v973
  %v976 = vpack.c.bf16 %v975, %v975
  %v978 = vunpack.c.l.b16 %v976
  %v979 = vpack.c.b16 %v978, %v978
  %980 = vrot.lane.b32.xlu0 %v979, 32
  %v981 = vpop.permute.xlu0 %980
  %983 = vst.msk [vmem:[#allocation3 + $0x4] sm:$0x4] %vm537, %v981
  %v984 = vld [vmem:[#allocation2 + $0x4] sm:$0x8]
  %v985 = vunpack.c.l.bf16 %v984
  %v986 = vld [vmem:[%s4] sm:$0xf]
  %v987 = vld [vmem:[%s4 + $0x4] sm:$0xf]
  %v988 = vld [vmem:[%s4 + $0x8] sm:$0xf]
  %v989 = vld [vmem:[%s4 + $0xc] sm:$0xf]
  %v990 = vrot.slane %v976, 2
  %991 = vrot.lane.b32.xlu0 %v990, 32
  %v992 = vpop.permute.xlu0 %991
  %v997 = vunpack.c.l.b16 %v986
  %v998 = vunpack.c.l.b16 %v987
  %v999 = vunpack.c.l.b16 %v988
  %v1000 = vunpack.c.l.b16 %v989
  %v1001 = vpack.c.b16 %v998, %v997
  %v1002 = vpack.c.b16 %v1000, %v999
  %v1006 = vsel %vm155, %v992, 0
  %1008 = vmatprep.subr.bf16.mxu0 0
  %1009 = vmatpush1.bf16.msra.mxu0 0
  %1010 = vmatprep.subr.bf16.mxu0 0
  %1011 = vmatpush1.bf16.msra.mxu0 0
  %1012 = vmatprep.subr.bf16.mxu0 0
  %1013 = vmatpush1.bf16.msra.mxu0 0
  %1014 = vmatprep.subr.bf16.mxu0 0
  %1015 = vmatpush1.bf16.msra.mxu0 0
  %1016 = vmatprep.subr.bf16.mxu0 0
  %1017 = vmatpush1.bf16.msra.mxu0 0
  %1018 = vmatprep.subr.bf16.mxu0 0
  %1019 = vmatpush1.bf16.msra.mxu0 0
  %1020 = vmatprep.subr.bf16.mxu0 0
  %1021 = vmatpush1.bf16.msra.mxu0 %v1002
  %1022 = vmatprep.subr.bf16.mxu0 0
  %1023 = vmatpush1.bf16.msra.mxu0 %v1001
  %1024 = vmatprep.subr.bf16.mxu0 0
  %1025 = vmatpush2.bf16.msra.mxu0 0
  %1026 = vmatprep.subr.bf16.mxu0 0
  %1027 = vmatpush2.bf16.msra.mxu0 0
  %1028 = vmatprep.subr.bf16.mxu0 0
  %1029 = vmatpush2.bf16.msra.mxu0 0
  %1030 = vmatprep.subr.bf16.mxu0 0
  %1031 = vmatpush2.bf16.msra.mxu0 0
  %1032 = vmatprep.subr.bf16.mxu0 0
  %1033 = vmatpush2.bf16.msra.mxu0 0
  %1034 = vmatprep.subr.bf16.mxu0 0
  %1035 = vmatpush2.bf16.msra.mxu0 0
  %1036 = vmatprep.subr.bf16.mxu0 0
  %1037 = vmatpush2.bf16.msra.mxu0 0
  %1038 = vmatprep.subr.bf16.mxu0 0
  %1039 = vmatpush2.bf16.msra.mxu0 0
  %1040 = vmatprep.mubr.bf16.mxu0 0
  %1041 = vmatmul.mubr.bf16.gmra.mxu0 %v1006
  %v1042 = vpop.f32.mrf.mxu0
  %v1043 = vadd.f32 0.0, %v1042
  %v1044 = vpop.f32.mrf.mxu0
  %v1045 = vpop.f32.mrf.mxu0
  %v1046 = vpop.f32.mrf.mxu0
  %1047 = vdwg.mxu0
  %v1049 = vrot.slane %v1043, 2
  %v1051 = vadd.f32 %v985, %v1049
  %v1052 = vxor.u32 %v1051, 2147483648
  %v1053 = vmul.f32 %v1052, 1.442695
  %v1054 = vpow.pop %v1053
  %v1055 = vadd.f32 %v1054, 1.0
  %v1056 = vrcp.pop %v1055
  %v1057 = vmul.f32 1.0, %v1056
  %v1058 = vmul.f32 %v1057, 2.0
  %v1059 = vsub.f32 %v1058, 1.0
  %v1061 = vrot.slane %v961, 6
  %v1063 = vmul.f32 %v1057, %v1061
  %1065 = vrot.lane.b32.xlu0 %v1059, 64
  %v1066 = vpop.permute.xlu0 %1065
  %v1068 = vmul.f32 %v1057, %v1066
  %1070 = vrot.lane.b32.xlu0 %v1068, 32
  %v1071 = vpop.permute.xlu0 %1070
  %v1073 = vadd.f32 %v1063, %v1071
  %v1074 = vmul.f32 %v1073, 2.0
  %v1075 = vxor.u32 %v1074, 2147483648
  %v1076 = vmul.f32 %v1075, 1.442695
  %v1077 = vpow.pop %v1076
  %v1078 = vadd.f32 %v1077, 1.0
  %v1079 = vrcp.pop %v1078
  %v1080 = vmul.f32 1.0, %v1079
  %v1081 = vmul.f32 %v1080, 2.0
  %v1082 = vsub.f32 %v1081, 1.0
  %1084 = vrot.lane.b32.xlu0 %v1082, 64
  %v1085 = vpop.permute.xlu0 %1084
  %v1087 = vmul.f32 %v1057, %v1085
  %v1088 = vpack.c.bf16 %v1087, %v1087
  %v1090 = vunpack.c.l.b16 %v1088
  %v1091 = vpack.c.b16 %v1090, %v1090
  %1092 = vrot.lane.b32.xlu0 %v1091, 32
  %v1093 = vpop.permute.xlu0 %1092
  %1095 = vst.msk [vmem:[#allocation3 + $0x4] sm:$0x8] %vm650, %v1093
  %v1096 = vld [vmem:[#allocation3] sm:$0xf]
  %v1097 = vld [vmem:[#allocation3 + $0x4] sm:$0xf]
  %v1098 = vld [vmem:[%s6] sm:$0xff]
  %v1099 = vld [vmem:[%s6 + $0x8] sm:$0xff]
  %v1100 = vld [vmem:[%s6 + $0x10] sm:$0xff]
  %v1101 = vld [vmem:[%s6 + $0x18] sm:$0xff]
  %v1102 = vld [vmem:[%s7] sm:$0x3]
  %v1104 = vlaneseq
  %v1105 = vshrl.u32 %v1104, 7
  %v1106 = vsub.s32 0, %v1105
  %v1107 = vrot.slane %v1102, %v1106
  %v1108 = vlaneseq
  %v1109 = vshrl.u32 %v1108, 7
  %v1110 = vsub.s32 1, %v1109
  %v1111 = vrot.slane %v1102, %v1110
  %v1116 = vunpack.c.l.b16 %v1096
  %v1117 = vunpack.c.l.b16 %v1097
  %v1118 = vpack.c.b16 %v1117, %v1116
  %v1123 = vunpack.c.l.b16 %v1098
  %v1124 = vunpack.c.h.b16 %v1098
  %v1125 = vunpack.c.l.b16 %v1099
  %v1126 = vunpack.c.h.b16 %v1099
  %v1127 = vunpack.c.l.b16 %v1100
  %v1128 = vunpack.c.h.b16 %v1100
  %v1129 = vunpack.c.l.b16 %v1101
  %v1130 = vunpack.c.h.b16 %v1101
  %v1131 = vpack.c.b16 %v1125, %v1123
  %v1132 = vpack.c.b16 %v1126, %v1124
  %v1133 = vpack.c.b16 %v1129, %v1127
  %v1134 = vpack.c.b16 %v1130, %v1128
  %v1140 = vsel %vm155, %v1118, 0
  %1142 = vmatprep.subr.bf16.mxu0 0
  %1143 = vmatpush1.bf16.msra.mxu0 0
  %1144 = vmatprep.subr.bf16.mxu0 0
  %1145 = vmatpush1.bf16.msra.mxu0 0
  %1146 = vmatprep.subr.bf16.mxu0 0
  %1147 = vmatpush1.bf16.msra.mxu0 0
  %1148 = vmatprep.subr.bf16.mxu0 0
  %1149 = vmatpush1.bf16.msra.mxu0 0
  %1150 = vmatprep.subr.bf16.mxu0 0
  %1151 = vmatpush1.bf16.msra.mxu0 0
  %1152 = vmatprep.subr.bf16.mxu0 0
  %1153 = vmatpush1.bf16.msra.mxu0 0
  %1154 = vmatprep.subr.bf16.mxu0 %v1134
  %1155 = vmatpush1.bf16.msra.mxu0 %v1133
  %1156 = vmatprep.subr.bf16.mxu0 %v1132
  %1157 = vmatpush1.bf16.msra.mxu0 %v1131
  %1158 = vmatprep.subr.bf16.mxu0 0
  %1159 = vmatpush2.bf16.msra.mxu0 0
  %1160 = vmatprep.subr.bf16.mxu0 0
  %1161 = vmatpush2.bf16.msra.mxu0 0
  %1162 = vmatprep.subr.bf16.mxu0 0
  %1163 = vmatpush2.bf16.msra.mxu0 0
  %1164 = vmatprep.subr.bf16.mxu0 0
  %1165 = vmatpush2.bf16.msra.mxu0 0
  %1166 = vmatprep.subr.bf16.mxu0 0
  %1167 = vmatpush2.bf16.msra.mxu0 0
  %1168 = vmatprep.subr.bf16.mxu0 0
  %1169 = vmatpush2.bf16.msra.mxu0 0
  %1170 = vmatprep.subr.bf16.mxu0 0
  %1171 = vmatpush2.bf16.msra.mxu0 0
  %1172 = vmatprep.subr.bf16.mxu0 0
  %1173 = vmatpush2.bf16.msra.mxu0 0
  %1174 = vmatprep.mubr.bf16.mxu0 0
  %1175 = vmatmul.mubr.bf16.gmra.mxu0 %v1140
  %v1176 = vpop.f32.mrf.mxu0
  %v1177 = vadd.f32 %v1107, %v1176
  %v1178 = vpop.f32.mrf.mxu0
  %v1179 = vadd.f32 %v1111, %v1178
  %v1180 = vpop.f32.mrf.mxu0
  %v1181 = vadd.f32 %v1107, %v1180
  %v1182 = vpop.f32.mrf.mxu0
  %v1183 = vadd.f32 %v1111, %v1182
  %1184 = vdwg.mxu0
  %v1185 = vtanh.pop %v1177
  %v1186 = vtanh.pop %v1179
  %v1187 = vtanh.pop %v1181
  %v1188 = vtanh.pop %v1183
  %v1189 = vld [vmem:[%s8] sm:$0x3]
  %v1191 = vlaneseq
  %v1192 = vshrl.u32 %v1191, 7
  %v1193 = vsub.s32 0, %v1192
  %v1194 = vrot.slane %v1189, %v1193
  %v1195 = vlaneseq
  %v1196 = vshrl.u32 %v1195, 7
  %v1197 = vsub.s32 1, %v1196
  %v1198 = vrot.slane %v1189, %v1197
  %v1201 = vmul.f32 %v1185, %v1194
  %v1202 = vmul.f32 %v1186, %v1198
  %v1203 = vmul.f32 %v1187, %v1194
  %v1204 = vmul.f32 %v1188, %v1198
  %v1209 = vcombine.low %v1201, %v1202
  %v1210 = vcombine.high %v1201, %v1202
  %v1212 = vunpack.c.l.s4 1983009808
  %v1213 = vunpack.c.0.s8 %v1212
  %v1214 = vlaneseq
  %v1215 = vshrl.u32 %v1214, 7
  %v1216 = vsub.s32 %v1213, %v1215
  %v1217 = vrot.slane %v1209, %v1216
  %v1219 = vunpack.c.l.s4 1983009808
  %v1220 = vunpack.c.0.s8 %v1219
  %v1221 = vlaneseq
  %v1222 = vshrl.u32 %v1221, 7
  %v1223 = vsub.s32 %v1220, %v1222
  %v1224 = vrot.slane %v1210, %v1223
  %v1225 = vcombine.high %v1217, %v1217
  %v1226 = vcombine.high %v1224, %v1224
  %v1227 = vcombine.low %v1203, %v1204
  %v1228 = vcombine.high %v1203, %v1204
  %v1230 = vunpack.c.l.s4 1983009808
  %v1231 = vunpack.c.0.s8 %v1230
  %v1232 = vlaneseq
  %v1233 = vshrl.u32 %v1232, 7
  %v1234 = vsub.s32 %v1231, %v1233
  %v1235 = vrot.slane %v1227, %v1234
  %v1237 = vunpack.c.l.s4 1983009808
  %v1238 = vunpack.c.0.s8 %v1237
  %v1239 = vlaneseq
  %v1240 = vshrl.u32 %v1239, 7
  %v1241 = vsub.s32 %v1238, %v1240
  %v1242 = vrot.slane %v1228, %v1241
  %v1243 = vcombine.high %v1235, %v1235
  %v1244 = vcombine.high %v1242, %v1242
  %v1246 = vunpack.c.l.s4 1983009808
  %v1247 = vunpack.c.0.s8 %v1246
  %v1248 = vlaneseq
  %v1249 = vshrl.u32 %v1248, 7
  %v1250 = vsub.s32 %v1247, %v1249
  %v1251 = vrot.slane %v1217, %v1250
  %v1252 = vcombine.high %v1251, %v1251
  %v1254 = vunpack.c.l.s4 1983009808
  %v1255 = vunpack.c.0.s8 %v1254
  %v1256 = vlaneseq
  %v1257 = vshrl.u32 %v1256, 7
  %v1258 = vsub.s32 %v1255, %v1257
  %v1259 = vrot.slane %v1225, %v1258
  %v1260 = vcombine.high %v1259, %v1259
  %v1262 = vunpack.c.l.s4 1983009808
  %v1263 = vunpack.c.0.s8 %v1262
  %v1264 = vlaneseq
  %v1265 = vshrl.u32 %v1264, 7
  %v1266 = vsub.s32 %v1263, %v1265
  %v1267 = vrot.slane %v1224, %v1266
  %v1268 = vcombine.high %v1267, %v1267
  %v1270 = vunpack.c.l.s4 1983009808
  %v1271 = vunpack.c.0.s8 %v1270
  %v1272 = vlaneseq
  %v1273 = vshrl.u32 %v1272, 7
  %v1274 = vsub.s32 %v1271, %v1273
  %v1275 = vrot.slane %v1226, %v1274
  %v1276 = vcombine.high %v1275, %v1275
  %v1278 = vunpack.c.l.s4 1983009808
  %v1279 = vunpack.c.0.s8 %v1278
  %v1280 = vlaneseq
  %v1281 = vshrl.u32 %v1280, 7
  %v1282 = vsub.s32 %v1279, %v1281
  %v1283 = vrot.slane %v1235, %v1282
  %v1284 = vcombine.high %v1283, %v1283
  %v1286 = vunpack.c.l.s4 1983009808
  %v1287 = vunpack.c.0.s8 %v1286
  %v1288 = vlaneseq
  %v1289 = vshrl.u32 %v1288, 7
  %v1290 = vsub.s32 %v1287, %v1289
  %v1291 = vrot.slane %v1243, %v1290
  %v1292 = vcombine.high %v1291, %v1291
  %v1294 = vunpack.c.l.s4 1983009808
  %v1295 = vunpack.c.0.s8 %v1294
  %v1296 = vlaneseq
  %v1297 = vshrl.u32 %v1296, 7
  %v1298 = vsub.s32 %v1295, %v1297
  %v1299 = vrot.slane %v1242, %v1298
  %v1300 = vcombine.high %v1299, %v1299
  %v1302 = vunpack.c.l.s4 1983009808
  %v1303 = vunpack.c.0.s8 %v1302
  %v1304 = vlaneseq
  %v1305 = vshrl.u32 %v1304, 7
  %v1306 = vsub.s32 %v1303, %v1305
  %v1307 = vrot.slane %v1244, %v1306
  %v1308 = vcombine.high %v1307, %v1307
  %vm1325 = vcmask 1041408
  %v1326 = vsel %vm1325, %v1251, 0.0
  %v1327 = vsel %vm1325, %v1252, 0.0
  %v1328 = vadd.f32 %v1326, %v1327
  %1329 = vadd.xlane.f32.xlu0 %v1328
  %v1330 = vpop.xlane.xlu0 %1329
  %v1331 = vsel %vm1325, %v1259, 0.0
  %v1332 = vsel %vm1325, %v1260, 0.0
  %v1333 = vadd.f32 %v1331, %v1332
  %1334 = vadd.xlane.f32.xlu0 %v1333
  %v1335 = vpop.xlane.xlu0 %1334
  %v1336 = vsel %vm1325, %v1267, 0.0
  %v1337 = vsel %vm1325, %v1268, 0.0
  %v1338 = vadd.f32 %v1336, %v1337
  %1339 = vadd.xlane.f32.xlu0 %v1338
  %v1340 = vpop.xlane.xlu0 %1339
  %v1341 = vsel %vm1325, %v1275, 0.0
  %v1342 = vsel %vm1325, %v1276, 0.0
  %v1343 = vadd.f32 %v1341, %v1342
  %1344 = vadd.xlane.f32.xlu0 %v1343
  %v1345 = vpop.xlane.xlu0 %1344
  %v1346 = vsel %vm1325, %v1283, 0.0
  %v1347 = vsel %vm1325, %v1284, 0.0
  %v1348 = vadd.f32 %v1346, %v1347
  %1349 = vadd.xlane.f32.xlu0 %v1348
  %v1350 = vpop.xlane.xlu0 %1349
  %v1351 = vsel %vm1325, %v1291, 0.0
  %v1352 = vsel %vm1325, %v1292, 0.0
  %v1353 = vadd.f32 %v1351, %v1352
  %1354 = vadd.xlane.f32.xlu0 %v1353
  %v1355 = vpop.xlane.xlu0 %1354
  %v1356 = vsel %vm1325, %v1299, 0.0
  %v1357 = vsel %vm1325, %v1300, 0.0
  %v1358 = vadd.f32 %v1356, %v1357
  %1359 = vadd.xlane.f32.xlu0 %v1358
  %v1360 = vpop.xlane.xlu0 %1359
  %v1361 = vsel %vm1325, %v1307, 0.0
  %v1362 = vsel %vm1325, %v1308, 0.0
  %v1363 = vadd.f32 %v1361, %v1362
  %1364 = vadd.xlane.f32.xlu0 %v1363
  %v1365 = vpop.xlane.xlu0 %1364
  %v1366 = vsel %vm1325, %v1330, -inf
  %v1367 = vsel %vm1325, %v1335, -inf
  %v1368 = vsel %vm1325, %v1340, -inf
  %v1369 = vsel %vm1325, %v1345, -inf
  %v1370 = vsel %vm1325, %v1350, -inf
  %v1371 = vmax.f32 %v1366, %v1370
  %v1372 = vsel %vm1325, %v1355, -inf
  %v1373 = vmax.f32 %v1367, %v1372
  %v1374 = vsel %vm1325, %v1360, -inf
  %v1375 = vmax.f32 %v1368, %v1374
  %v1376 = vsel %vm1325, %v1365, -inf
  %v1377 = vmax.f32 %v1369, %v1376
  %v1378 = vmax.f32 %v1371, %v1373
  %v1379 = vmax.f32 %v1375, %v1377
  %v1380 = vmax.f32 %v1378, %v1379
  %v1381 = vsub.f32 %v1330, %v1380
  %v1382 = vsub.f32 %v1335, %v1380
  %v1383 = vsub.f32 %v1340, %v1380
  %v1384 = vsub.f32 %v1345, %v1380
  %v1385 = vsub.f32 %v1350, %v1380
  %v1386 = vsub.f32 %v1355, %v1380
  %v1387 = vsub.f32 %v1360, %v1380
  %v1388 = vsub.f32 %v1365, %v1380
  %v1389 = vmul.f32 %v1381, 1.442695
  %v1390 = vpow.pop %v1389
  %v1391 = vmul.f32 %v1382, 1.442695
  %v1392 = vpow.pop %v1391
  %v1393 = vmul.f32 %v1383, 1.442695
  %v1394 = vpow.pop %v1393
  %v1395 = vmul.f32 %v1384, 1.442695
  %v1396 = vpow.pop %v1395
  %v1397 = vmul.f32 %v1385, 1.442695
  %v1398 = vpow.pop %v1397
  %v1399 = vmul.f32 %v1386, 1.442695
  %v1400 = vpow.pop %v1399
  %v1401 = vmul.f32 %v1387, 1.442695
  %v1402 = vpow.pop %v1401
  %v1403 = vmul.f32 %v1388, 1.442695
  %v1404 = vpow.pop %v1403
  %v1405 = vsel %vm1325, %v1390, 0.0
  %v1406 = vsel %vm1325, %v1392, 0.0
  %v1407 = vadd.f32 %v1405, %v1406
  %v1408 = vsel %vm1325, %v1394, 0.0
  %v1409 = vadd.f32 %v1407, %v1408
  %v1410 = vsel %vm1325, %v1396, 0.0
  %v1411 = vadd.f32 %v1409, %v1410
  %v1412 = vsel %vm1325, %v1398, 0.0
  %v1413 = vadd.f32 %v1411, %v1412
  %v1414 = vsel %vm1325, %v1400, 0.0
  %v1415 = vadd.f32 %v1413, %v1414
  %v1416 = vsel %vm1325, %v1402, 0.0
  %v1417 = vadd.f32 %v1415, %v1416
  %v1418 = vsel %vm1325, %v1404, 0.0
  %v1419 = vadd.f32 %v1417, %v1418
  %v1420 = vrcp.pop %v1419
  %v1421 = vmul.f32 %v1390, %v1420
  %v1422 = vmul.f32 %v1392, %v1420
  %v1423 = vmul.f32 %v1394, %v1420
  %v1424 = vmul.f32 %v1396, %v1420
  %v1425 = vmul.f32 %v1398, %v1420
  %v1426 = vmul.f32 %v1400, %v1420
  %v1427 = vmul.f32 %v1402, %v1420
  %v1428 = vmul.f32 %v1404, %v1420
  %vm1429 = vcmask 1024
  %1430 = vst.msk [vmem:[%s20] sm:$0x3] %vm1429, %v1421
  %1431 = vst.msk [vmem:[%s20 + $0x2] sm:$0x3] %vm1429, %v1422
  %1432 = vst.msk [vmem:[%s20 + $0x4] sm:$0x3] %vm1429, %v1423
  %1433 = vst.msk [vmem:[%s20 + $0x6] sm:$0x3] %vm1429, %v1424
  %1434 = vst.msk [vmem:[%s20 + $0x8] sm:$0x3] %vm1429, %v1425
  %1435 = vst.msk [vmem:[%s20 + $0xa] sm:$0x3] %vm1429, %v1426
  %1436 = vst.msk [vmem:[%s20 + $0xc] sm:$0x3] %vm1429, %v1427
  %1437 = vst.msk [vmem:[%s20 + $0xe] sm:$0x3] %vm1429, %v1428
  %v1438 = vld [vmem:[#allocation3] sm:$0xf]
  %v1439 = vld [vmem:[#allocation3 + $0x4] sm:$0xf]
  %v1440 = vunpack.c.l.bf16 %v1438
  %v1441 = vunpack.c.l.bf16 %v1439
  %v1444 = vcombine.high %v1440, %v1440
  %v1446 = vunpack.c.l.s4 1983009808
  %v1447 = vunpack.c.0.s8 %v1446
  %v1448 = vlaneseq
  %v1449 = vshrl.u32 %v1448, 7
  %v1450 = vsub.s32 %v1447, %v1449
  %v1451 = vrot.slane %v1440, %v1450
  %v1453 = vunpack.c.l.s4 1983009808
  %v1454 = vunpack.c.0.s8 %v1453
  %v1455 = vlaneseq
  %v1456 = vshrl.u32 %v1455, 7
  %v1457 = vsub.s32 %v1454, %v1456
  %v1458 = vrot.slane %v1444, %v1457
  %v1459 = vcombine.high %v1451, %v1451
  %v1460 = vcombine.high %v1458, %v1458
  %v1461 = vcombine.high %v1441, %v1441
  %v1463 = vunpack.c.l.s4 1983009808
  %v1464 = vunpack.c.0.s8 %v1463
  %v1465 = vlaneseq
  %v1466 = vshrl.u32 %v1465, 7
  %v1467 = vsub.s32 %v1464, %v1466
  %v1468 = vrot.slane %v1441, %v1467
  %v1470 = vunpack.c.l.s4 1983009808
  %v1471 = vunpack.c.0.s8 %v1470
  %v1472 = vlaneseq
  %v1473 = vshrl.u32 %v1472, 7
  %v1474 = vsub.s32 %v1471, %v1473
  %v1475 = vrot.slane %v1461, %v1474
  %v1476 = vcombine.high %v1468, %v1468
  %v1477 = vcombine.high %v1475, %v1475
  %v1486 = vmul.f32 %v1451, %v1421
  %v1487 = vmul.f32 %v1459, %v1422
  %v1488 = vmul.f32 %v1458, %v1423
  %v1489 = vmul.f32 %v1460, %v1424
  %v1490 = vmul.f32 %v1468, %v1425
  %v1491 = vmul.f32 %v1476, %v1426
  %v1492 = vmul.f32 %v1475, %v1427
  %v1493 = vmul.f32 %v1477, %v1428
  %vm1494 = vcmask 254976
  %v1495 = vsel %vm1494, %v1486, 0.0
  %v1496 = vsel %vm1494, %v1487, 0.0
  %v1497 = vadd.f32 %v1495, %v1496
  %v1498 = vsel %vm1494, %v1488, 0.0
  %v1499 = vadd.f32 %v1497, %v1498
  %v1500 = vsel %vm1494, %v1489, 0.0
  %v1501 = vadd.f32 %v1499, %v1500
  %v1502 = vsel %vm1494, %v1490, 0.0
  %v1503 = vadd.f32 %v1501, %v1502
  %v1504 = vsel %vm1494, %v1491, 0.0
  %v1505 = vadd.f32 %v1503, %v1504
  %v1506 = vsel %vm1494, %v1492, 0.0
  %v1507 = vadd.f32 %v1505, %v1506
  %v1508 = vsel %vm1494, %v1493, 0.0
  %v1509 = vadd.f32 %v1507, %v1508
  %v1510 = vld [vmem:[%s1] sm:$0x3]
  %v1511 = vld [vmem:[%s2] sm:$0x3]
  %v1512 = vld [vmem:[%s10] sm:$0xff]
  %v1513 = vld [vmem:[%s10 + $0x8] sm:$0xff]
  %v1514 = vld [vmem:[%s10 + $0x10] sm:$0xff]
  %v1515 = vld [vmem:[%s10 + $0x18] sm:$0xff]
  %v1516 = vld [vmem:[%s11] sm:$0x1]
  %v1518 = vlaneseq
  %v1519 = vshrl.u32 %v1518, 7
  %v1520 = vsub.s32 0, %v1519
  %v1521 = vrot.slane %v1516, %v1520
  %v1524 = vsel %vm155, %v1511, 0
  %1526 = vmatprep.subr.mxu0 0.0
  %1527 = vmatpush1.msra.mxu0 0.0
  %1528 = vmatprep.subr.mxu0 0.0
  %1529 = vmatpush1.msra.mxu0 0.0
  %1530 = vmatprep.subr.mxu0 0.0
  %1531 = vmatpush1.msra.mxu0 0.0
  %1532 = vmatprep.subr.mxu0 0.0
  %1533 = vmatpush1.msra.mxu0 0.0
  %1534 = vmatprep.subr.mxu0 0.0
  %1535 = vmatpush1.msra.mxu0 0.0
  %1536 = vmatprep.subr.mxu0 0.0
  %1537 = vmatpush1.msra.mxu0 0.0
  %1538 = vmatprep.subr.mxu0 0.0
  %1539 = vmatpush1.msra.mxu0 0.0
  %1540 = vmatprep.subr.mxu0 0.0
  %1541 = vmatpush1.msra.mxu0 0.0
  %1542 = vmatprep.subr.mxu0 0.0
  %1543 = vmatpush1.msra.mxu0 0.0
  %1544 = vmatprep.subr.mxu0 0.0
  %1545 = vmatpush1.msra.mxu0 0.0
  %1546 = vmatprep.subr.mxu0 0.0
  %1547 = vmatpush1.msra.mxu0 0.0
  %1548 = vmatprep.subr.mxu0 0.0
  %1549 = vmatpush1.msra.mxu0 0.0
  %1550 = vmatprep.subr.mxu0 0.0
  %1551 = vmatpush1.msra.mxu0 %v1515
  %1552 = vmatprep.subr.mxu0 0.0
  %1553 = vmatpush1.msra.mxu0 %v1514
  %1554 = vmatprep.subr.mxu0 0.0
  %1555 = vmatpush1.msra.mxu0 %v1513
  %1556 = vmatprep.subr.mxu0 0.0
  %1557 = vmatpush1.msra.mxu0 %v1512
  %1558 = vmatprep.subr.mxu0 0.0
  %1559 = vmatpush2.msra.mxu0 0.0
  %1560 = vmatprep.subr.mxu0 0.0
  %1561 = vmatpush2.msra.mxu0 0.0
  %1562 = vmatprep.subr.mxu0 0.0
  %1563 = vmatpush2.msra.mxu0 0.0
  %1564 = vmatprep.subr.mxu0 0.0
  %1565 = vmatpush2.msra.mxu0 0.0
  %1566 = vmatprep.subr.mxu0 0.0
  %1567 = vmatpush2.msra.mxu0 0.0
  %1568 = vmatprep.subr.mxu0 0.0
  %1569 = vmatpush2.msra.mxu0 0.0
  %1570 = vmatprep.subr.mxu0 0.0
  %1571 = vmatpush2.msra.mxu0 0.0
  %1572 = vmatprep.subr.mxu0 0.0
  %1573 = vmatpush2.msra.mxu0 0.0
  %1574 = vmatprep.subr.mxu0 0.0
  %1575 = vmatpush2.msra.mxu0 0.0
  %1576 = vmatprep.subr.mxu0 0.0
  %1577 = vmatpush2.msra.mxu0 0.0
  %1578 = vmatprep.subr.mxu0 0.0
  %1579 = vmatpush2.msra.mxu0 0.0
  %1580 = vmatprep.subr.mxu0 0.0
  %1581 = vmatpush2.msra.mxu0 0.0
  %1582 = vmatprep.subr.mxu0 0.0
  %1583 = vmatpush2.msra.mxu0 0.0
  %1584 = vmatprep.subr.mxu0 0.0
  %1585 = vmatpush2.msra.mxu0 0.0
  %1586 = vmatprep.subr.mxu0 0.0
  %1587 = vmatpush2.msra.mxu0 0.0
  %1588 = vmatprep.subr.mxu0 0.0
  %1589 = vmatpush2.msra.mxu0 0.0
  %1590 = vmatprep.mubr.f32.mxu0 0.0
  %1591 = vmatmul.mubr.f32.gmra.mxu0 %v1524
  %v1592 = vpop.f32.mrf.mxu0
  %v1593 = vadd.f32 %v1521, %v1592
  %v1594 = vpop.f32.mrf.mxu0
  %1595 = vdwg.mxu0
  %v1596 = vld [vmem:[%s9] sm:$0xff]
  %v1597 = vld [vmem:[%s9 + $0x8] sm:$0xff]
  %v1598 = vld [vmem:[%s9 + $0x10] sm:$0xff]
  %v1599 = vld [vmem:[%s9 + $0x18] sm:$0xff]
  %v1601 = vsel %vm155, %v1510, 0
  %1603 = vmatprep.subr.mxu0 0.0
  %1604 = vmatpush1.msra.mxu0 0.0
  %1605 = vmatprep.subr.mxu0 0.0
  %1606 = vmatpush1.msra.mxu0 0.0
  %1607 = vmatprep.subr.mxu0 0.0
  %1608 = vmatpush1.msra.mxu0 0.0
  %1609 = vmatprep.subr.mxu0 0.0
  %1610 = vmatpush1.msra.mxu0 0.0
  %1611 = vmatprep.subr.mxu0 0.0
  %1612 = vmatpush1.msra.mxu0 0.0
  %1613 = vmatprep.subr.mxu0 0.0
  %1614 = vmatpush1.msra.mxu0 0.0
  %1615 = vmatprep.subr.mxu0 0.0
  %1616 = vmatpush1.msra.mxu0 0.0
  %1617 = vmatprep.subr.mxu0 0.0
  %1618 = vmatpush1.msra.mxu0 0.0
  %1619 = vmatprep.subr.mxu0 0.0
  %1620 = vmatpush1.msra.mxu0 0.0
  %1621 = vmatprep.subr.mxu0 0.0
  %1622 = vmatpush1.msra.mxu0 0.0
  %1623 = vmatprep.subr.mxu0 0.0
  %1624 = vmatpush1.msra.mxu0 0.0
  %1625 = vmatprep.subr.mxu0 0.0
  %1626 = vmatpush1.msra.mxu0 0.0
  %1627 = vmatprep.subr.mxu0 0.0
  %1628 = vmatpush1.msra.mxu0 %v1599
  %1629 = vmatprep.subr.mxu0 0.0
  %1630 = vmatpush1.msra.mxu0 %v1598
  %1631 = vmatprep.subr.mxu0 0.0
  %1632 = vmatpush1.msra.mxu0 %v1597
  %1633 = vmatprep.subr.mxu0 0.0
  %1634 = vmatpush1.msra.mxu0 %v1596
  %1635 = vmatprep.subr.mxu0 0.0
  %1636 = vmatpush2.msra.mxu0 0.0
  %1637 = vmatprep.subr.mxu0 0.0
  %1638 = vmatpush2.msra.mxu0 0.0
  %1639 = vmatprep.subr.mxu0 0.0
  %1640 = vmatpush2.msra.mxu0 0.0
  %1641 = vmatprep.subr.mxu0 0.0
  %1642 = vmatpush2.msra.mxu0 0.0
  %1643 = vmatprep.subr.mxu0 0.0
  %1644 = vmatpush2.msra.mxu0 0.0
  %1645 = vmatprep.subr.mxu0 0.0
  %1646 = vmatpush2.msra.mxu0 0.0
  %1647 = vmatprep.subr.mxu0 0.0
  %1648 = vmatpush2.msra.mxu0 0.0
  %1649 = vmatprep.subr.mxu0 0.0
  %1650 = vmatpush2.msra.mxu0 0.0
  %1651 = vmatprep.subr.mxu0 0.0
  %1652 = vmatpush2.msra.mxu0 0.0
  %1653 = vmatprep.subr.mxu0 0.0
  %1654 = vmatpush2.msra.mxu0 0.0
  %1655 = vmatprep.subr.mxu0 0.0
  %1656 = vmatpush2.msra.mxu0 0.0
  %1657 = vmatprep.subr.mxu0 0.0
  %1658 = vmatpush2.msra.mxu0 0.0
  %1659 = vmatprep.subr.mxu0 0.0
  %1660 = vmatpush2.msra.mxu0 0.0
  %1661 = vmatprep.subr.mxu0 0.0
  %1662 = vmatpush2.msra.mxu0 0.0
  %1663 = vmatprep.subr.mxu0 0.0
  %1664 = vmatpush2.msra.mxu0 0.0
  %1665 = vmatprep.subr.mxu0 0.0
  %1666 = vmatpush2.msra.mxu0 0.0
  %1667 = vmatprep.mubr.f32.mxu0 0.0
  %1668 = vmatmul.mubr.f32.gmra.mxu0 %v1601
  %v1669 = vpop.f32.mrf.mxu0
  %v1670 = vadd.f32 %v1593, %v1669
  %v1671 = vpop.f32.mrf.mxu0
  %1672 = vdwg.mxu0
  %v1674 = vsel %vm155, %v1509, 0
  %1676 = vmatprep.subr.mxu0 0.0
  %1677 = vmatpush1.msra.mxu0 0.0
  %1678 = vmatprep.subr.mxu0 0.0
  %1679 = vmatpush1.msra.mxu0 0.0
  %1680 = vmatprep.subr.mxu0 0.0
  %1681 = vmatpush1.msra.mxu0 0.0
  %1682 = vmatprep.subr.mxu0 0.0
  %1683 = vmatpush1.msra.mxu0 0.0
  %1684 = vmatprep.subr.mxu0 0.0
  %1685 = vmatpush1.msra.mxu0 0.0
  %1686 = vmatprep.subr.mxu0 0.0
  %1687 = vmatpush1.msra.mxu0 0.0
  %1688 = vmatprep.subr.mxu0 0.0
  %1689 = vmatpush1.msra.mxu0 0.0
  %1690 = vmatprep.subr.mxu0 0.0
  %1691 = vmatpush1.msra.mxu0 0.0
  %1692 = vmatprep.subr.mxu0 0.0
  %1693 = vmatpush1.msra.mxu0 0.0
  %1694 = vmatprep.subr.mxu0 0.0
  %1695 = vmatpush1.msra.mxu0 0.0
  %1696 = vmatprep.subr.mxu0 0.0
  %1697 = vmatpush1.msra.mxu0 0.0
  %1698 = vmatprep.subr.mxu0 0.0
  %1699 = vmatpush1.msra.mxu0 0.0
  %1700 = vmatprep.subr.mxu0 0.0
  %1701 = vmatpush1.msra.mxu0 %v1599
  %1702 = vmatprep.subr.mxu0 0.0
  %1703 = vmatpush1.msra.mxu0 %v1598
  %1704 = vmatprep.subr.mxu0 0.0
  %1705 = vmatpush1.msra.mxu0 %v1597
  %1706 = vmatprep.subr.mxu0 0.0
  %1707 = vmatpush1.msra.mxu0 %v1596
  %1708 = vmatprep.subr.mxu0 0.0
  %1709 = vmatpush2.msra.mxu0 0.0
  %1710 = vmatprep.subr.mxu0 0.0
  %1711 = vmatpush2.msra.mxu0 0.0
  %1712 = vmatprep.subr.mxu0 0.0
  %1713 = vmatpush2.msra.mxu0 0.0
  %1714 = vmatprep.subr.mxu0 0.0
  %1715 = vmatpush2.msra.mxu0 0.0
  %1716 = vmatprep.subr.mxu0 0.0
  %1717 = vmatpush2.msra.mxu0 0.0
  %1718 = vmatprep.subr.mxu0 0.0
  %1719 = vmatpush2.msra.mxu0 0.0
  %1720 = vmatprep.subr.mxu0 0.0
  %1721 = vmatpush2.msra.mxu0 0.0
  %1722 = vmatprep.subr.mxu0 0.0
  %1723 = vmatpush2.msra.mxu0 0.0
  %1724 = vmatprep.subr.mxu0 0.0
  %1725 = vmatpush2.msra.mxu0 0.0
  %1726 = vmatprep.subr.mxu0 0.0
  %1727 = vmatpush2.msra.mxu0 0.0
  %1728 = vmatprep.subr.mxu0 0.0
  %1729 = vmatpush2.msra.mxu0 0.0
  %1730 = vmatprep.subr.mxu0 0.0
  %1731 = vmatpush2.msra.mxu0 0.0
  %1732 = vmatprep.subr.mxu0 0.0
  %1733 = vmatpush2.msra.mxu0 0.0
  %1734 = vmatprep.subr.mxu0 0.0
  %1735 = vmatpush2.msra.mxu0 0.0
  %1736 = vmatprep.subr.mxu0 0.0
  %1737 = vmatpush2.msra.mxu0 0.0
  %1738 = vmatprep.subr.mxu0 0.0
  %1739 = vmatpush2.msra.mxu0 0.0
  %1740 = vmatprep.mubr.f32.mxu0 0.0
  %1741 = vmatmul.mubr.f32.gmra.mxu0 %v1674
  %v1742 = vpop.f32.mrf.mxu0
  %v1743 = vadd.f32 %v1593, %v1742
  %v1744 = vpop.f32.mrf.mxu0
  %1745 = vdwg.mxu0
  %v1746 = vld [vmem:[%s12] sm:$0xff]
  %v1747 = vld [vmem:[%s12 + $0x8] sm:$0xff]
  %v1748 = vld [vmem:[%s12 + $0x10] sm:$0xff]
  %v1749 = vld [vmem:[%s12 + $0x18] sm:$0xff]
  %v1750 = vld [vmem:[%s12 + $0x20] sm:$0xff]
  %v1751 = vld [vmem:[%s12 + $0x28] sm:$0xff]
  %v1752 = vld [vmem:[%s12 + $0x30] sm:$0xff]
  %v1753 = vld [vmem:[%s12 + $0x38] sm:$0xff]
  %v1754 = vld [vmem:[%s13] sm:$0x1]
  %v1756 = vlaneseq
  %v1757 = vshrl.u32 %v1756, 7
  %v1758 = vsub.s32 0, %v1757
  %v1759 = vrot.slane %v1754, %v1758
  %vm1761 = vcmask 523264
  %v1763 = vsel %vm1761, %v1670, 0
  %1765 = vmatprep.subr.mxu0 0.0
  %1766 = vmatpush1.msra.mxu0 0.0
  %1767 = vmatprep.subr.mxu0 0.0
  %1768 = vmatpush1.msra.mxu0 0.0
  %1769 = vmatprep.subr.mxu0 0.0
  %1770 = vmatpush1.msra.mxu0 0.0
  %1771 = vmatprep.subr.mxu0 0.0
  %1772 = vmatpush1.msra.mxu0 0.0
  %1773 = vmatprep.subr.mxu0 0.0
  %1774 = vmatpush1.msra.mxu0 0.0
  %1775 = vmatprep.subr.mxu0 0.0
  %1776 = vmatpush1.msra.mxu0 0.0
  %1777 = vmatprep.subr.mxu0 0.0
  %1778 = vmatpush1.msra.mxu0 0.0
  %1779 = vmatprep.subr.mxu0 0.0
  %1780 = vmatpush1.msra.mxu0 0.0
  %1781 = vmatprep.subr.mxu0 0.0
  %1782 = vmatpush1.msra.mxu0 %v1753
  %1783 = vmatprep.subr.mxu0 0.0
  %1784 = vmatpush1.msra.mxu0 %v1752
  %1785 = vmatprep.subr.mxu0 0.0
  %1786 = vmatpush1.msra.mxu0 %v1751
  %1787 = vmatprep.subr.mxu0 0.0
  %1788 = vmatpush1.msra.mxu0 %v1750
  %1789 = vmatprep.subr.mxu0 0.0
  %1790 = vmatpush1.msra.mxu0 %v1749
  %1791 = vmatprep.subr.mxu0 0.0
  %1792 = vmatpush1.msra.mxu0 %v1748
  %1793 = vmatprep.subr.mxu0 0.0
  %1794 = vmatpush1.msra.mxu0 %v1747
  %1795 = vmatprep.subr.mxu0 0.0
  %1796 = vmatpush1.msra.mxu0 %v1746
  %1797 = vmatprep.subr.mxu0 0.0
  %1798 = vmatpush2.msra.mxu0 0.0
  %1799 = vmatprep.subr.mxu0 0.0
  %1800 = vmatpush2.msra.mxu0 0.0
  %1801 = vmatprep.subr.mxu0 0.0
  %1802 = vmatpush2.msra.mxu0 0.0
  %1803 = vmatprep.subr.mxu0 0.0
  %1804 = vmatpush2.msra.mxu0 0.0
  %1805 = vmatprep.subr.mxu0 0.0
  %1806 = vmatpush2.msra.mxu0 0.0
  %1807 = vmatprep.subr.mxu0 0.0
  %1808 = vmatpush2.msra.mxu0 0.0
  %1809 = vmatprep.subr.mxu0 0.0
  %1810 = vmatpush2.msra.mxu0 0.0
  %1811 = vmatprep.subr.mxu0 0.0
  %1812 = vmatpush2.msra.mxu0 0.0
  %1813 = vmatprep.subr.mxu0 0.0
  %1814 = vmatpush2.msra.mxu0 0.0
  %1815 = vmatprep.subr.mxu0 0.0
  %1816 = vmatpush2.msra.mxu0 0.0
  %1817 = vmatprep.subr.mxu0 0.0
  %1818 = vmatpush2.msra.mxu0 0.0
  %1819 = vmatprep.subr.mxu0 0.0
  %1820 = vmatpush2.msra.mxu0 0.0
  %1821 = vmatprep.subr.mxu0 0.0
  %1822 = vmatpush2.msra.mxu0 0.0
  %1823 = vmatprep.subr.mxu0 0.0
  %1824 = vmatpush2.msra.mxu0 0.0
  %1825 = vmatprep.subr.mxu0 0.0
  %1826 = vmatpush2.msra.mxu0 0.0
  %1827 = vmatprep.subr.mxu0 0.0
  %1828 = vmatpush2.msra.mxu0 0.0
  %1829 = vmatprep.mubr.f32.mxu0 0.0
  %1830 = vmatmul.mubr.f32.gmra.mxu0 %v1763
  %v1831 = vpop.f32.mrf.mxu0
  %v1832 = vadd.f32 %v1759, %v1831
  %v1833 = vpop.f32.mrf.mxu0
  %1834 = vdwg.mxu0
  %v1835 = vmax.f32 %v1832, 0.0
  %v1837 = vsel %vm1761, %v1743, 0
  %1839 = vmatprep.subr.mxu0 0.0
  %1840 = vmatpush1.msra.mxu0 0.0
  %1841 = vmatprep.subr.mxu0 0.0
  %1842 = vmatpush1.msra.mxu0 0.0
  %1843 = vmatprep.subr.mxu0 0.0
  %1844 = vmatpush1.msra.mxu0 0.0
  %1845 = vmatprep.subr.mxu0 0.0
  %1846 = vmatpush1.msra.mxu0 0.0
  %1847 = vmatprep.subr.mxu0 0.0
  %1848 = vmatpush1.msra.mxu0 0.0
  %1849 = vmatprep.subr.mxu0 0.0
  %1850 = vmatpush1.msra.mxu0 0.0
  %1851 = vmatprep.subr.mxu0 0.0
  %1852 = vmatpush1.msra.mxu0 0.0
  %1853 = vmatprep.subr.mxu0 0.0
  %1854 = vmatpush1.msra.mxu0 0.0
  %1855 = vmatprep.subr.mxu0 0.0
  %1856 = vmatpush1.msra.mxu0 %v1753
  %1857 = vmatprep.subr.mxu0 0.0
  %1858 = vmatpush1.msra.mxu0 %v1752
  %1859 = vmatprep.subr.mxu0 0.0
  %1860 = vmatpush1.msra.mxu0 %v1751
  %1861 = vmatprep.subr.mxu0 0.0
  %1862 = vmatpush1.msra.mxu0 %v1750
  %1863 = vmatprep.subr.mxu0 0.0
  %1864 = vmatpush1.msra.mxu0 %v1749
  %1865 = vmatprep.subr.mxu0 0.0
  %1866 = vmatpush1.msra.mxu0 %v1748
  %1867 = vmatprep.subr.mxu0 0.0
  %1868 = vmatpush1.msra.mxu0 %v1747
  %1869 = vmatprep.subr.mxu0 0.0
  %1870 = vmatpush1.msra.mxu0 %v1746
  %1871 = vmatprep.subr.mxu0 0.0
  %1872 = vmatpush2.msra.mxu0 0.0
  %1873 = vmatprep.subr.mxu0 0.0
  %1874 = vmatpush2.msra.mxu0 0.0
  %1875 = vmatprep.subr.mxu0 0.0
  %1876 = vmatpush2.msra.mxu0 0.0
  %1877 = vmatprep.subr.mxu0 0.0
  %1878 = vmatpush2.msra.mxu0 0.0
  %1879 = vmatprep.subr.mxu0 0.0
  %1880 = vmatpush2.msra.mxu0 0.0
  %1881 = vmatprep.subr.mxu0 0.0
  %1882 = vmatpush2.msra.mxu0 0.0
  %1883 = vmatprep.subr.mxu0 0.0
  %1884 = vmatpush2.msra.mxu0 0.0
  %1885 = vmatprep.subr.mxu0 0.0
  %1886 = vmatpush2.msra.mxu0 0.0
  %1887 = vmatprep.subr.mxu0 0.0
  %1888 = vmatpush2.msra.mxu0 0.0
  %1889 = vmatprep.subr.mxu0 0.0
  %1890 = vmatpush2.msra.mxu0 0.0
  %1891 = vmatprep.subr.mxu0 0.0
  %1892 = vmatpush2.msra.mxu0 0.0
  %1893 = vmatprep.subr.mxu0 0.0
  %1894 = vmatpush2.msra.mxu0 0.0
  %1895 = vmatprep.subr.mxu0 0.0
  %1896 = vmatpush2.msra.mxu0 0.0
  %1897 = vmatprep.subr.mxu0 0.0
  %1898 = vmatpush2.msra.mxu0 0.0
  %1899 = vmatprep.subr.mxu0 0.0
  %1900 = vmatpush2.msra.mxu0 0.0
  %1901 = vmatprep.subr.mxu0 0.0
  %1902 = vmatpush2.msra.mxu0 0.0
  %1903 = vmatprep.mubr.f32.mxu0 0.0
  %1904 = vmatmul.mubr.f32.gmra.mxu0 %v1837
  %v1905 = vpop.f32.mrf.mxu0
  %v1906 = vadd.f32 %v1759, %v1905
  %v1907 = vpop.f32.mrf.mxu0
  %1908 = vdwg.mxu0
  %v1909 = vmax.f32 %v1906, 0.0
  %v1910 = vld [vmem:[%s14] sm:$0xff]
  %v1911 = vld [vmem:[%s14 + $0x8] sm:$0xff]
  %v1912 = vld [vmem:[%s14 + $0x10] sm:$0xff]
  %v1913 = vld [vmem:[%s14 + $0x18] sm:$0xff]
  %v1914 = vld [vmem:[%s15] sm:$0xff]
  %v1915 = vld [vmem:[%s15 + $0x8] sm:$0xff]
  %v1916 = vld [vmem:[%s15 + $0x10] sm:$0xff]
  %v1917 = vld [vmem:[%s15 + $0x18] sm:$0xff]
  %v1919 = vsel %vm155, %v1835, 0
  %1921 = vmatprep.subr.mxu0 0.0
  %1922 = vmatpush1.msra.mxu0 0.0
  %1923 = vmatprep.subr.mxu0 0.0
  %1924 = vmatpush1.msra.mxu0 0.0
  %1925 = vmatprep.subr.mxu0 0.0
  %1926 = vmatpush1.msra.mxu0 0.0
  %1927 = vmatprep.subr.mxu0 0.0
  %1928 = vmatpush1.msra.mxu0 0.0
  %1929 = vmatprep.subr.mxu0 0.0
  %1930 = vmatpush1.msra.mxu0 0.0
  %1931 = vmatprep.subr.mxu0 0.0
  %1932 = vmatpush1.msra.mxu0 0.0
  %1933 = vmatprep.subr.mxu0 0.0
  %1934 = vmatpush1.msra.mxu0 0.0
  %1935 = vmatprep.subr.mxu0 0.0
  %1936 = vmatpush1.msra.mxu0 0.0
  %1937 = vmatprep.subr.mxu0 0.0
  %1938 = vmatpush1.msra.mxu0 0.0
  %1939 = vmatprep.subr.mxu0 0.0
  %1940 = vmatpush1.msra.mxu0 0.0
  %1941 = vmatprep.subr.mxu0 0.0
  %1942 = vmatpush1.msra.mxu0 0.0
  %1943 = vmatprep.subr.mxu0 0.0
  %1944 = vmatpush1.msra.mxu0 0.0
  %1945 = vmatprep.subr.mxu0 0.0
  %1946 = vmatpush1.msra.mxu0 %v1917
  %1947 = vmatprep.subr.mxu0 0.0
  %1948 = vmatpush1.msra.mxu0 %v1916
  %1949 = vmatprep.subr.mxu0 0.0
  %1950 = vmatpush1.msra.mxu0 %v1915
  %1951 = vmatprep.subr.mxu0 0.0
  %1952 = vmatpush1.msra.mxu0 %v1914
  %1953 = vmatprep.subr.mxu0 0.0
  %1954 = vmatpush2.msra.mxu0 0.0
  %1955 = vmatprep.subr.mxu0 0.0
  %1956 = vmatpush2.msra.mxu0 0.0
  %1957 = vmatprep.subr.mxu0 0.0
  %1958 = vmatpush2.msra.mxu0 0.0
  %1959 = vmatprep.subr.mxu0 0.0
  %1960 = vmatpush2.msra.mxu0 0.0
  %1961 = vmatprep.subr.mxu0 0.0
  %1962 = vmatpush2.msra.mxu0 0.0
  %1963 = vmatprep.subr.mxu0 0.0
  %1964 = vmatpush2.msra.mxu0 0.0
  %1965 = vmatprep.subr.mxu0 0.0
  %1966 = vmatpush2.msra.mxu0 0.0
  %1967 = vmatprep.subr.mxu0 0.0
  %1968 = vmatpush2.msra.mxu0 0.0
  %1969 = vmatprep.subr.mxu0 0.0
  %1970 = vmatpush2.msra.mxu0 0.0
  %1971 = vmatprep.subr.mxu0 0.0
  %1972 = vmatpush2.msra.mxu0 0.0
  %1973 = vmatprep.subr.mxu0 0.0
  %1974 = vmatpush2.msra.mxu0 0.0
  %1975 = vmatprep.subr.mxu0 0.0
  %1976 = vmatpush2.msra.mxu0 0.0
  %1977 = vmatprep.subr.mxu0 0.0
  %1978 = vmatpush2.msra.mxu0 0.0
  %1979 = vmatprep.subr.mxu0 0.0
  %1980 = vmatpush2.msra.mxu0 0.0
  %1981 = vmatprep.subr.mxu0 0.0
  %1982 = vmatpush2.msra.mxu0 0.0
  %1983 = vmatprep.subr.mxu0 0.0
  %1984 = vmatpush2.msra.mxu0 0.0
  %1985 = vmatprep.mubr.f32.mxu0 0.0
  %1986 = vmatmul.mubr.f32.gmra.mxu0 %v1919
  %v1987 = vpop.f32.mrf.mxu0
  %v1988 = vadd.f32 0.0, %v1987
  %v1989 = vpop.f32.mrf.mxu0
  %1990 = vdwg.mxu0
  %v1992 = vsel %vm155, %v1909, 0
  %1994 = vmatprep.subr.mxu0 0.0
  %1995 = vmatpush1.msra.mxu0 0.0
  %1996 = vmatprep.subr.mxu0 0.0
  %1997 = vmatpush1.msra.mxu0 0.0
  %1998 = vmatprep.subr.mxu0 0.0
  %1999 = vmatpush1.msra.mxu0 0.0
  %2000 = vmatprep.subr.mxu0 0.0
  %2001 = vmatpush1.msra.mxu0 0.0
  %2002 = vmatprep.subr.mxu0 0.0
  %2003 = vmatpush1.msra.mxu0 0.0
  %2004 = vmatprep.subr.mxu0 0.0
  %2005 = vmatpush1.msra.mxu0 0.0
  %2006 = vmatprep.subr.mxu0 0.0
  %2007 = vmatpush1.msra.mxu0 0.0
  %2008 = vmatprep.subr.mxu0 0.0
  %2009 = vmatpush1.msra.mxu0 0.0
  %2010 = vmatprep.subr.mxu0 0.0
  %2011 = vmatpush1.msra.mxu0 0.0
  %2012 = vmatprep.subr.mxu0 0.0
  %2013 = vmatpush1.msra.mxu0 0.0
  %2014 = vmatprep.subr.mxu0 0.0
  %2015 = vmatpush1.msra.mxu0 0.0
  %2016 = vmatprep.subr.mxu0 0.0
  %2017 = vmatpush1.msra.mxu0 0.0
  %2018 = vmatprep.subr.mxu0 0.0
  %2019 = vmatpush1.msra.mxu0 %v1913
  %2020 = vmatprep.subr.mxu0 0.0
  %2021 = vmatpush1.msra.mxu0 %v1912
  %2022 = vmatprep.subr.mxu0 0.0
  %2023 = vmatpush1.msra.mxu0 %v1911
  %2024 = vmatprep.subr.mxu0 0.0
  %2025 = vmatpush1.msra.mxu0 %v1910
  %2026 = vmatprep.subr.mxu0 0.0
  %2027 = vmatpush2.msra.mxu0 0.0
  %2028 = vmatprep.subr.mxu0 0.0
  %2029 = vmatpush2.msra.mxu0 0.0
  %2030 = vmatprep.subr.mxu0 0.0
  %2031 = vmatpush2.msra.mxu0 0.0
  %2032 = vmatprep.subr.mxu0 0.0
  %2033 = vmatpush2.msra.mxu0 0.0
  %2034 = vmatprep.subr.mxu0 0.0
  %2035 = vmatpush2.msra.mxu0 0.0
  %2036 = vmatprep.subr.mxu0 0.0
  %2037 = vmatpush2.msra.mxu0 0.0
  %2038 = vmatprep.subr.mxu0 0.0
  %2039 = vmatpush2.msra.mxu0 0.0
  %2040 = vmatprep.subr.mxu0 0.0
  %2041 = vmatpush2.msra.mxu0 0.0
  %2042 = vmatprep.subr.mxu0 0.0
  %2043 = vmatpush2.msra.mxu0 0.0
  %2044 = vmatprep.subr.mxu0 0.0
  %2045 = vmatpush2.msra.mxu0 0.0
  %2046 = vmatprep.subr.mxu0 0.0
  %2047 = vmatpush2.msra.mxu0 0.0
  %2048 = vmatprep.subr.mxu0 0.0
  %2049 = vmatpush2.msra.mxu0 0.0
  %2050 = vmatprep.subr.mxu0 0.0
  %2051 = vmatpush2.msra.mxu0 0.0
  %2052 = vmatprep.subr.mxu0 0.0
  %2053 = vmatpush2.msra.mxu0 0.0
  %2054 = vmatprep.subr.mxu0 0.0
  %2055 = vmatpush2.msra.mxu0 0.0
  %2056 = vmatprep.subr.mxu0 0.0
  %2057 = vmatpush2.msra.mxu0 0.0
  %2058 = vmatprep.mubr.f32.mxu0 0.0
  %2059 = vmatmul.mubr.f32.gmra.mxu0 %v1992
  %v2060 = vpop.f32.mrf.mxu0
  %v2061 = vadd.f32 %v1988, %v2060
  %v2062 = vpop.f32.mrf.mxu0
  %2063 = vdwg.mxu0
  %v2064 = vld [vmem:[%s16] sm:$0x1]
  %v2066 = vlaneseq
  %v2067 = vshrl.u32 %v2066, 7
  %v2068 = vsub.s32 0, %v2067
  %v2069 = vrot.slane %v2064, %v2068
  %v2071 = vadd.f32 %v2061, %v2069
  %v2072 = vmax.f32 %v2071, 0.0
  %v2073 = vld [vmem:[%s17] sm:$0x1]
  %v2075 = vlaneseq
  %v2076 = vshrl.u32 %v2075, 7
  %v2077 = vsub.s32 0, %v2076
  %v2078 = vrot.slane %v2073, %v2077
  %v2080 = vmul.f32 %v2072, %v2078
  %v2081 = vsel %vm1494, %v2080, 0.0
  %2082 = vadd.xlane.f32.xlu0 %v2081
  %v2083 = vpop.xlane.xlu0 %2082
  %v2084 = vld [vmem:[#allocation4] sm:$0x1]
  %v2086 = vlaneseq
  %v2087 = vshrl.u32 %v2086, 7
  %v2088 = vsub.s32 0, %v2087
  %v2089 = vrot.slane %v2084, %v2088
  %v2091 = vadd.f32 %v2083, %v2089
  %2092 = vst.msk [vmem:[%s19] sm:$0x3] %vm1429, %v2091
  // Predicated region
  $region78: #{lspm_forward.1} parent=0 // pred_check
    _
  $region79: #{lspm_forward.1} parent=0 // pred_check_branch
    %2094 = sbr.rel (0) target = $region81
  $region80: #{lspm_forward.1} parent=0 // pred_region
    _
  $region81: #{lspm_forward.1} parent=0 // pred_fallthru
    _
  // Predicated region
  $region82: #{lspm_forward.1} parent=0 // pred_check
    _
  $region83: #{lspm_forward.1} parent=0 // pred_check_branch
    %2096 = sbr.rel (0) target = $region85
  $region84: #{lspm_forward.1} parent=0 // pred_region
    _
  $region85: #{lspm_forward.1} parent=0 // pred_fallthru
    _
  // Predicated region
  $region86: #{lspm_forward.1} parent=0 // pred_check
    _
  $region87: #{lspm_forward.1} parent=0 // pred_check_branch
    %2098 = sbr.rel (0) target = $region89
  $region88: #{lspm_forward.1} parent=0 // pred_region
    _
  $region89: #{lspm_forward.1} parent=0 // pred_fallthru
    _
  // Predicated region
  $region90: #{lspm_forward.1} parent=0 // pred_check
    _
  $region91: #{lspm_forward.1} parent=0 // pred_check_branch
    %2100 = sbr.rel (0) target = $region93
  $region92: #{lspm_forward.1} parent=0 // pred_region
    _
  $region93: #{lspm_forward.1} parent=0 // pred_fallthru
    _

</llo_original>
